<compile_context>
chip_gen: v5e
topology: v5e:2x2
jax: 0.10.0
libtpu: 0.0.40
codegen_flags: <defaults>
</compile_context>

<pallas_src>
import jax
import jax.numpy as jnp
from jax.experimental import pallas as pl
from jax.experimental.pallas import tpu as pltpu


def _round_up(x, m):
    return ((x + m - 1) // m) * m


# ----------------------------------------------------------------------------
# Kernel: grid = (row_tiles, 2 passes, vocab_tiles)
#   pass 0: compute hidden once per row tile, accumulate running max / sum-exp
#   pass 1: recompute logits tile, write logits - lse (lane-dense stores)
# ----------------------------------------------------------------------------
def mlp_kernel(x_ref, w1_ref, b1_ref, w2_ref, b2_ref, w3_ref, b3_ref,
               o_ref, h_ref, m_ref, l_ref, lse_ref):
    p = pl.program_id(1)   # 0 = statistics pass, 1 = write pass
    vj = pl.program_id(2)  # vocab tile index

    @pl.when((p == 0) & (vj == 0))
    def _():
        # Hidden MLP (2 fc layers + ReLU), computed once per row tile, kept in
        # a bf16 VMEM scratch for all vocab tiles / both passes.
        h = jnp.dot(x_ref[...], w1_ref[...],
                    preferred_element_type=jnp.float32) + b1_ref[...]
        h = jnp.maximum(h, 0.0).astype(jnp.bfloat16)
        h = jnp.dot(h, w2_ref[...],
                    preferred_element_type=jnp.float32) + b2_ref[...]
        h_ref[...] = jnp.maximum(h, 0.0).astype(jnp.bfloat16)
        m_ref[...] = jnp.full(m_ref.shape, -jnp.inf, dtype=m_ref.dtype)
        l_ref[...] = jnp.zeros(l_ref.shape, dtype=l_ref.dtype)

    # Logits tile for this vocab slice (f32 accumulation on the MXU).  Padded
    # vocab columns carry a -1e30 bias so they never win the max and their
    # exp() underflows to 0.
    s = jnp.dot(h_ref[...], w3_ref[...],
                preferred_element_type=jnp.float32) + b3_ref[...]

    @pl.when(p == 0)
    def _():
        # Flash-style running max / sum-exp across vocab tiles.
        m_new = jnp.maximum(m_ref[...], jnp.max(s, axis=-1, keepdims=True))
        l_ref[...] = (l_ref[...] * jnp.exp(m_ref[...] - m_new)
                      + jnp.sum(jnp.exp(s - m_new), axis=-1, keepdims=True))
        m_ref[...] = m_new

    @pl.when((p == 1) & (vj == 0))
    def _():
        lse_ref[...] = m_ref[...] + jnp.log(l_ref[...])

    @pl.when(p == 1)
    def _():
        o_ref[...] = (s - lse_ref[...]).astype(o_ref.dtype)


# ----------------------------------------------------------------------------
# VMEM accounting and tile selection (generation-aware)
# ----------------------------------------------------------------------------
def _vmem_estimate(tile_r, tile_v, Dp, out_bytes, weight_bufs=2):
    resident = weight_bufs * (2 * Dp * Dp * 2 + 2 * Dp * 4)   # W1, W2, b1, b2
    act = 2 * tile_r * Dp * 2                                 # x blocks (2-buf)
    w3 = 2 * (Dp * tile_v * 2 + tile_v * 4)                   # W3/b3 blocks
    out = 2 * tile_r * tile_v * out_bytes                     # output blocks
    scratch = tile_r * Dp * 2 + 3 * tile_r * 4                # h, m, l, lse
    temps = 3 * tile_r * tile_v * 4                           # logits/exp temps
    return resident + act + w3 + out + scratch + temps


def _pick_tiles(rows, V, Dp, out_bytes, budget, max_tile_r):
    v_lane = _round_up(V, 128)
    if rows <= max_tile_r:
        r_cands = [_round_up(rows, 8)]
    else:
        r_cands = [r for r in (512, 384, 256, 128) if r <= max_tile_r] or [128]
    v_cands = sorted({min(c, v_lane) for c in (2048, 1024, 512, 256, 128)},
                     reverse=True)
    # Budget assumes double-buffered weights (weight_bufs=2) so the fallback
    # path (no pl.Buffered(1)) is guaranteed to fit as well.
    for tr in r_cands:
        for tv in v_cands:
            if _vmem_estimate(tr, tv, Dp, out_bytes, weight_bufs=2) \
                    <= budget - (8 << 20):
                return tr, tv
    return r_cands[-1], 128


# ----------------------------------------------------------------------------
# pallas_call wrapper
# ----------------------------------------------------------------------------
_WEIGHT_PATH = {"single_buffered_weights": None}   # recorded, not printed


def _pallas_mlp(x2d, w1p, b1p, w2p, b2p, w3p, b3p, *, tile_r, tile_v,
                out_dtype, vmem_limit, cost, single_buffer_weights):
    Rp, Dp = x2d.shape
    Vp = w3p.shape[1]
    n_r = Rp // tile_r
    n_v = Vp // tile_v

    res_kw = dict(pipeline_mode=pl.Buffered(1)) if single_buffer_weights else {}

    in_specs = [
        pl.BlockSpec((tile_r, Dp), lambda r, p, v: (r, 0)),          # activations
        pl.BlockSpec((Dp, Dp), lambda r, p, v: (0, 0), **res_kw),    # W1 (resident)
        pl.BlockSpec((1, Dp), lambda r, p, v: (0, 0), **res_kw),     # b1
        pl.BlockSpec((Dp, Dp), lambda r, p, v: (0, 0), **res_kw),    # W2 (resident)
        pl.BlockSpec((1, Dp), lambda r, p, v: (0, 0), **res_kw),     # b2
        pl.BlockSpec((Dp, tile_v), lambda r, p, v: (0, v)),          # W3 (streamed)
        pl.BlockSpec((1, tile_v), lambda r, p, v: (0, v)),           # b3 (streamed)
    ]
    # Pass 0 pins the first output block (index (r, 0)) so nothing is flushed
    # until pass 1 writes real data; each block is written to HBM exactly once.
    out_specs = pl.BlockSpec((tile_r, tile_v), lambda r, p, v: (r, v * p))

    return pl.pallas_call(
        mlp_kernel,
        out_shape=jax.ShapeDtypeStruct((Rp, Vp), out_dtype),
        grid_spec=pltpu.PrefetchScalarGridSpec(
            num_scalar_prefetch=0,
            grid=(n_r, 2, n_v),
            in_specs=in_specs,
            out_specs=out_specs,
            scratch_shapes=[
                pltpu.VMEM((tile_r, Dp), jnp.bfloat16),   # hidden activations
                pltpu.VMEM((tile_r, 1), jnp.float32),     # running max
                pltpu.VMEM((tile_r, 1), jnp.float32),     # running sum-exp
                pltpu.VMEM((tile_r, 1), jnp.float32),     # lse
            ]),
        compiler_params=pltpu.CompilerParams(
            dimension_semantics=("parallel", "arbitrary", "arbitrary"),
            vmem_limit_bytes=int(vmem_limit)),
        cost_estimate=cost,
    )(x2d, w1p, b1p, w2p, b2p, w3p, b3p)


# ----------------------------------------------------------------------------
# Forward pass (matches MLP.forward with num_layers=2)
# ----------------------------------------------------------------------------
def mlp_forward(x_ids, emb, w1, b1, w2, b2, w3, b3, *, out_dtype=jnp.float32):
    B, T, n_gram = x_ids.shape
    H = emb.shape[1]
    D = H * n_gram
    V = w3.shape[1]
    rows = B * T
    Dp = _round_up(D, 128)
    out_bytes = jnp.dtype(out_dtype).itemsize

    # Generation-aware VMEM budget and row-tile cap.
    try:
        vmem_cap = int(pltpu.get_tpu_info().vmem_capacity_bytes)
    except Exception:
        vmem_cap = 64 << 20
    budget = (48 << 20) if vmem_cap <= (64 << 20) else (100 << 20)
    try:
        kind = jax.devices()[0].device_kind.lower()
    except Exception:
        kind = ""
    is_v5e = ("v5 lite" in kind) or ("v5e" in kind)
    max_tile_r = 128 if is_v5e else (256 if vmem_cap <= (64 << 20) else 512)

    tile_r, tile_v = _pick_tiles(rows, V, Dp, out_bytes, budget, max_tile_r)
    Rp = _round_up(rows, tile_r)
    Vp = _round_up(V, tile_v)

    # Embedding lookup in bf16 (cast the tiny table, not the big slab), flatten
    # (B, T, n_gram, H) -> (rows, D); pad only when it is not a no-op.
    x = jnp.take(emb.astype(jnp.bfloat16), x_ids, axis=0).reshape(rows, D)
    if (Rp, Dp) != (rows, D):
        x = jnp.pad(x, ((0, Rp - rows), (0, Dp - D)))

    def _pad2(w, r, c):
        return w if w.shape == (r, c) else jnp.pad(
            w, ((0, r - w.shape[0]), (0, c - w.shape[1])))

    w1p = _pad2(w1, Dp, Dp).astype(jnp.bfloat16)
    w2p = _pad2(w2, Dp, Dp).astype(jnp.bfloat16)
    w3p = _pad2(w3, Dp, Vp).astype(jnp.bfloat16)
    b1p = (b1 if D == Dp else jnp.pad(b1, (0, Dp - D))).reshape(1, Dp).astype(jnp.float32)
    b2p = (b2 if D == Dp else jnp.pad(b2, (0, Dp - D))).reshape(1, Dp).astype(jnp.float32)
    # Padded vocab logits get -1e30 so exp() underflows and they never affect lse.
    b3p = (b3 if V == Vp else jnp.pad(b3, (0, Vp - V), constant_values=-1e30))
    b3p = b3p.reshape(1, Vp).astype(jnp.float32)

    n_r = Rp // tile_r
    vmem_limit = min(budget,
                     max(32 << 20,
                         _vmem_estimate(tile_r, tile_v, Dp, out_bytes, 2) + (8 << 20)))

    # Cost estimate: hidden matmuls once, vocab matmul in both passes, exp in
    # pass 0, W3/b3 streamed twice per row tile.
    flops = 2 * Rp * Dp * (2 * Dp) + 2 * (2 * Rp * Dp * Vp)
    transcendentals = Rp * Vp + Rp
    bytes_accessed = (Rp * Dp * 2
                      + 2 * (Dp * Dp * 2) + 2 * Dp * 4
                      + 2 * n_r * (Dp * Vp * 2 + Vp * 4)
                      + Rp * Vp * out_bytes)
    cost = pl.CostEstimate(flops=int(flops),
                           transcendentals=int(transcendentals),
                           bytes_accessed=int(bytes_accessed))

    kwargs = dict(tile_r=tile_r, tile_v=tile_v, out_dtype=out_dtype,
                  vmem_limit=vmem_limit, cost=cost)
    if hasattr(pl, "Buffered"):
        try:
            out2d = _pallas_mlp(x, w1p, b1p, w2p, b2p, w3p, b3p,
                                single_buffer_weights=True, **kwargs)
            _WEIGHT_PATH["single_buffered_weights"] = True
        except Exception:
            # Only the Buffered(1) request differs between the two paths; the
            # VMEM budget already assumes double-buffered weights, and any real
            # lowering bug will surface from the un-wrapped fallback below.
            out2d = _pallas_mlp(x, w1p, b1p, w2p, b2p, w3p, b3p,
                                single_buffer_weights=False, **kwargs)
            _WEIGHT_PATH["single_buffered_weights"] = False
    else:
        out2d = _pallas_mlp(x, w1p, b1p, w2p, b2p, w3p, b3p,
                            single_buffer_weights=False, **kwargs)
        _WEIGHT_PATH["single_buffered_weights"] = False

    # Strip padding, restore (B, T, V), then the module's permute(0, 2, 1).
    logp = out2d[:rows, :V].reshape(B, T, V)
    return jnp.transpose(logp, (0, 2, 1))


def reference_forward(x_ids, emb, w1, b1, w2, b2, w3, b3):
    B, T, n_gram = x_ids.shape
    H = emb.shape[1]
    x = jnp.take(emb, x_ids, axis=0).reshape(B, T, n_gram * H)
    x = jax.nn.relu(x @ w1 + b1)
    x = jax.nn.relu(x @ w2 + b2)
    x = x @ w3 + b3
    return jnp.transpose(jax.nn.log_softmax(x, axis=-1), (0, 2, 1))


if __name__ == "__main__":
    # Small shapes consistent with the module (n_gram=1, num_layers=2); vocab=80
    # and hidden=32 deliberately exercise the 128-padding paths.
    vocab_size = 80
    hidden_size = 32
    n_gram = 1
    B, T = 2, 8
    D = hidden_size * n_gram

    key = jax.random.PRNGKey(0)
    k_ids, k_emb, k1, k1b, k2, k2b, k3, k3b = jax.random.split(key, 8)

    x_ids = jax.random.randint(k_ids, (B, T, n_gram), 0, vocab_size, dtype=jnp.int32)

    # Deterministic synthetic parameters (Linear stored as (in, out): y = x @ W + b).
    emb = jax.random.normal(k_emb, (vocab_size, hidden_size), jnp.float32) * 0.1
    w1 = jax.random.normal(k1, (D, D), jnp.float32) * 0.1
    b1 = jax.random.normal(k1b, (D,), jnp.float32) * 0.1
    w2 = jax.random.normal(k2, (D, D), jnp.float32) * 0.1
    b2 = jax.random.normal(k2b, (D,), jnp.float32) * 0.1
    w3 = jax.random.normal(k3, (D, vocab_size), jnp.float32) * 0.1
    b3 = jax.random.normal(k3b, (vocab_size,), jnp.float32) * 0.1

    out = mlp_forward(x_ids, emb, w1, b1, w2, b2, w3, b3)
    out = jax.block_until_ready(out)

    ref = reference_forward(x_ids, emb, w1, b1, w2, b2, w3, b3)
    assert out.shape == (B, vocab_size, T), out.shape
    max_err = float(jnp.max(jnp.abs(out - ref)))
    # bf16 MXU inputs with f32 accumulation -> loosened tolerance vs f32 reference.
    assert max_err < 2e-2, f"mismatch vs JAX reference, max abs err = {max_err}"

    print("KERNEL_OK")
</pallas_src>

<mosaic_0001>
module attributes {stable_mosaic.version = 11 : i64} {
  func.func @mlp_kernel(%arg0: i32, %arg1: i32, %arg2: i32, %arg3: memref<16x128xbf16, #tpu.memory_space<vmem>>, %arg4: memref<128x128xbf16, #tpu.memory_space<vmem>>, %arg5: memref<1x128xf32, #tpu.memory_space<vmem>>, %arg6: memref<128x128xbf16, #tpu.memory_space<vmem>>, %arg7: memref<1x128xf32, #tpu.memory_space<vmem>>, %arg8: memref<128x128xbf16, #tpu.memory_space<vmem>>, %arg9: memref<1x128xf32, #tpu.memory_space<vmem>>, %arg10: memref<16x128xf32, #tpu.memory_space<vmem>>, %arg11: memref<16x128xbf16, #tpu.memory_space<vmem>>, %arg12: memref<16x1xf32, #tpu.memory_space<vmem>>, %arg13: memref<16x1xf32, #tpu.memory_space<vmem>>, %arg14: memref<16x1xf32, #tpu.memory_space<vmem>>) attributes {dimension_semantics = [#tpu.dimension_semantics<parallel>, #tpu.dimension_semantics<arbitrary>, #tpu.dimension_semantics<arbitrary>], iteration_bounds = array<i64: 1, 2, 1>, scalar_prefetch = 0 : i64, scratch_operands = 4 : i64, tpu.core_type = #tpu.core_type<tc>, window_params = [{transform_indices = @transform_0, window_bounds = array<i64: 16, 128>}, {pipeline_mode = #tpu.pipeline_mode<synchronous>, transform_indices = @transform_1, window_bounds = array<i64: 128, 128>}, {pipeline_mode = #tpu.pipeline_mode<synchronous>, transform_indices = @transform_2, window_bounds = array<i64: 1, 128>}, {pipeline_mode = #tpu.pipeline_mode<synchronous>, transform_indices = @transform_3, window_bounds = array<i64: 128, 128>}, {pipeline_mode = #tpu.pipeline_mode<synchronous>, transform_indices = @transform_4, window_bounds = array<i64: 1, 128>}, {transform_indices = @transform_5, window_bounds = array<i64: 128, 128>}, {transform_indices = @transform_6, window_bounds = array<i64: 1, 128>}, {transform_indices = @transform_7, window_bounds = array<i64: 16, 128>}]} {
    %c0_i32 = arith.constant 0 : i32
    %0 = arith.cmpi eq, %arg1, %c0_i32 : i32
    %c0_i32_0 = arith.constant 0 : i32
    %1 = arith.cmpi eq, %arg2, %c0_i32_0 : i32
    %2 = arith.andi %0, %1 : i1
    %3 = arith.extui %2 : i1 to i32
    %c0_i32_1 = arith.constant 0 : i32
    %4 = arith.cmpi ne, %3, %c0_i32_1 : i32
    scf.if %4 {
      %c0_13 = arith.constant 0 : index
      %c0_14 = arith.constant 0 : index
      %22 = vector.load %arg3[%c0_13, %c0_14] : memref<16x128xbf16, #tpu.memory_space<vmem>>, vector<16x128xbf16>
      %c0_15 = arith.constant 0 : index
      %c0_16 = arith.constant 0 : index
      %23 = vector.load %arg4[%c0_15, %c0_16] : memref<128x128xbf16, #tpu.memory_space<vmem>>, vector<128x128xbf16>
      %cst_17 = arith.constant dense<0.000000e+00> : vector<16x128xf32>
      %24 = tpu.matmul %22, %23, %cst_17 {dimension_numbers = #tpu.dot_dimension_numbers<[1], [0], [0], [1], [0, 0, 1, 1], [], []>} : vector<16x128xbf16>, vector<128x128xbf16>, vector<16x128xf32> -> vector<16x128xf32>
      %c0_18 = arith.constant 0 : index
      %c0_19 = arith.constant 0 : index
      %25 = vector.load %arg5[%c0_18, %c0_19] : memref<1x128xf32, #tpu.memory_space<vmem>>, vector<1x128xf32>
      %26 = vector.broadcast %25 : vector<1x128xf32> to vector<16x128xf32>
      %27 = arith.addf %24, %26 : vector<16x128xf32>
      %cst_20 = arith.constant 0.000000e+00 : f32
      %28 = vector.broadcast %cst_20 : f32 to vector<16x128xf32>
      %29 = arith.maximumf %27, %28 : vector<16x128xf32>
      %30 = arith.truncf %29 : vector<16x128xf32> to vector<16x128xbf16>
      %c0_21 = arith.constant 0 : index
      %c0_22 = arith.constant 0 : index
      %31 = vector.load %arg6[%c0_21, %c0_22] : memref<128x128xbf16, #tpu.memory_space<vmem>>, vector<128x128xbf16>
      %cst_23 = arith.constant dense<0.000000e+00> : vector<16x128xf32>
      %32 = tpu.matmul %30, %31, %cst_23 {dimension_numbers = #tpu.dot_dimension_numbers<[1], [0], [0], [1], [0, 0, 1, 1], [], []>} : vector<16x128xbf16>, vector<128x128xbf16>, vector<16x128xf32> -> vector<16x128xf32>
      %c0_24 = arith.constant 0 : index
      %c0_25 = arith.constant 0 : index
      %33 = vector.load %arg7[%c0_24, %c0_25] : memref<1x128xf32, #tpu.memory_space<vmem>>, vector<1x128xf32>
      %34 = vector.broadcast %33 : vector<1x128xf32> to vector<16x128xf32>
      %35 = arith.addf %32, %34 : vector<16x128xf32>
      %cst_26 = arith.constant 0.000000e+00 : f32
      %36 = vector.broadcast %cst_26 : f32 to vector<16x128xf32>
      %37 = arith.maximumf %35, %36 : vector<16x128xf32>
      %38 = arith.truncf %37 : vector<16x128xf32> to vector<16x128xbf16>
      %c0_27 = arith.constant 0 : index
      %c0_28 = arith.constant 0 : index
      %39 = vector.load %arg11[%c0_27, %c0_28] : memref<16x128xbf16, #tpu.memory_space<vmem>>, vector<16x128xbf16>
      tpu.vector_store %arg11[%c0_27, %c0_28], %38 {strides = array<i32>} : memref<16x128xbf16, #tpu.memory_space<vmem>>, vector<16x128xbf16>,
      %cst_29 = arith.constant 0xFF800000 : f32
      %40 = vector.broadcast %cst_29 : f32 to vector<16x1xf32>
      %c0_30 = arith.constant 0 : index
      %c0_31 = arith.constant 0 : index
      %41 = vector.load %arg12[%c0_30, %c0_31] : memref<16x1xf32, #tpu.memory_space<vmem>>, vector<16x1xf32>
      tpu.vector_store %arg12[%c0_30, %c0_31], %40 {strides = array<i32>} : memref<16x1xf32, #tpu.memory_space<vmem>>, vector<16x1xf32>,
      %cst_32 = arith.constant 0.000000e+00 : f32
      %42 = vector.broadcast %cst_32 : f32 to vector<16x1xf32>
      %c0_33 = arith.constant 0 : index
      %c0_34 = arith.constant 0 : index
      %43 = vector.load %arg13[%c0_33, %c0_34] : memref<16x1xf32, #tpu.memory_space<vmem>>, vector<16x1xf32>
      tpu.vector_store %arg13[%c0_33, %c0_34], %42 {strides = array<i32>} : memref<16x1xf32, #tpu.memory_space<vmem>>, vector<16x1xf32>,
    } else {
    }
    %c0 = arith.constant 0 : index
    %c0_2 = arith.constant 0 : index
    %5 = vector.load %arg11[%c0, %c0_2] : memref<16x128xbf16, #tpu.memory_space<vmem>>, vector<16x128xbf16>
    %c0_3 = arith.constant 0 : index
    %c0_4 = arith.constant 0 : index
    %6 = vector.load %arg8[%c0_3, %c0_4] : memref<128x128xbf16, #tpu.memory_space<vmem>>, vector<128x128xbf16>
    %cst = arith.constant dense<0.000000e+00> : vector<16x128xf32>
    %7 = tpu.matmul %5, %6, %cst {dimension_numbers = #tpu.dot_dimension_numbers<[1], [0], [0], [1], [0, 0, 1, 1], [], []>} : vector<16x128xbf16>, vector<128x128xbf16>, vector<16x128xf32> -> vector<16x128xf32>
    %c0_5 = arith.constant 0 : index
    %c0_6 = arith.constant 0 : index
    %8 = vector.load %arg9[%c0_5, %c0_6] : memref<1x128xf32, #tpu.memory_space<vmem>>, vector<1x128xf32>
    %9 = vector.broadcast %8 : vector<1x128xf32> to vector<16x128xf32>
    %10 = arith.addf %7, %9 : vector<16x128xf32>
    %c0_i32_7 = arith.constant 0 : i32
    %11 = arith.cmpi eq, %arg1, %c0_i32_7 : i32
    %12 = arith.extui %11 : i1 to i32
    %c0_i32_8 = arith.constant 0 : i32
    %13 = arith.cmpi ne, %12, %c0_i32_8 : i32
    scf.if %13 {
      %c0_13 = arith.constant 0 : index
      %c0_14 = arith.constant 0 : index
      %22 = vector.load %arg12[%c0_13, %c0_14] : memref<16x1xf32, #tpu.memory_space<vmem>>, vector<16x1xf32>
      %cst_15 = arith.constant dense<0xFF800000> : vector<16xf32>
      %23 = vector.multi_reduction <maximumf>, %10, %cst_15 [1] : vector<16x128xf32> to vector<16xf32>
      %24 = vector.shape_cast %23 : vector<16xf32> to vector<16x1xf32>
      %25 = arith.maximumf %22, %24 : vector<16x1xf32>
      %c0_16 = arith.constant 0 : index
      %c0_17 = arith.constant 0 : index
      %26 = vector.load %arg13[%c0_16, %c0_17] : memref<16x1xf32, #tpu.memory_space<vmem>>, vector<16x1xf32>
      %c0_18 = arith.constant 0 : index
      %c0_19 = arith.constant 0 : index
      %27 = vector.load %arg12[%c0_18, %c0_19] : memref<16x1xf32, #tpu.memory_space<vmem>>, vector<16x1xf32>
      %28 = arith.subf %27, %25 : vector<16x1xf32>
      %29 = math.exp %28 : vector<16x1xf32>
      %30 = arith.mulf %26, %29 : vector<16x1xf32>
      %31 = vector.broadcast %25 : vector<16x1xf32> to vector<16x128xf32>
      %32 = arith.subf %10, %31 : vector<16x128xf32>
      %33 = math.exp %32 : vector<16x128xf32>
      %cst_20 = arith.constant dense<0.000000e+00> : vector<16xf32>
      %34 = vector.multi_reduction <add>, %33, %cst_20 [1] : vector<16x128xf32> to vector<16xf32>
      %35 = vector.shape_cast %34 : vector<16xf32> to vector<16x1xf32>
      %36 = arith.addf %30, %35 : vector<16x1xf32>
      %c0_21 = arith.constant 0 : index
      %c0_22 = arith.constant 0 : index
      %37 = vector.load %arg13[%c0_21, %c0_22] : memref<16x1xf32, #tpu.memory_space<vmem>>, vector<16x1xf32>
      tpu.vector_store %arg13[%c0_21, %c0_22], %36 {strides = array<i32>} : memref<16x1xf32, #tpu.memory_space<vmem>>, vector<16x1xf32>,
      %c0_23 = arith.constant 0 : index
      %c0_24 = arith.constant 0 : index
      %38 = vector.load %arg12[%c0_23, %c0_24] : memref<16x1xf32, #tpu.memory_space<vmem>>, vector<16x1xf32>
      tpu.vector_store %arg12[%c0_23, %c0_24], %25 {strides = array<i32>} : memref<16x1xf32, #tpu.memory_space<vmem>>, vector<16x1xf32>,
    } else {
    }
    %c1_i32 = arith.constant 1 : i32
    %14 = arith.cmpi eq, %arg1, %c1_i32 : i32
    %c0_i32_9 = arith.constant 0 : i32
    %15 = arith.cmpi eq, %arg2, %c0_i32_9 : i32
    %16 = arith.andi %14, %15 : i1
    %17 = arith.extui %16 : i1 to i32
    %c0_i32_10 = arith.constant 0 : i32
    %18 = arith.cmpi ne, %17, %c0_i32_10 : i32
    scf.if %18 {
      %c0_13 = arith.constant 0 : index
      %c0_14 = arith.constant 0 : index
      %22 = vector.load %arg12[%c0_13, %c0_14] : memref<16x1xf32, #tpu.memory_space<vmem>>, vector<16x1xf32>
      %c0_15 = arith.constant 0 : index
      %c0_16 = arith.constant 0 : index
      %23 = vector.load %arg13[%c0_15, %c0_16] : memref<16x1xf32, #tpu.memory_space<vmem>>, vector<16x1xf32>
      %24 = math.log %23 : vector<16x1xf32>
      %25 = arith.addf %22, %24 : vector<16x1xf32>
      %c0_17 = arith.constant 0 : index
      %c0_18 = arith.constant 0 : index
      %26 = vector.load %arg14[%c0_17, %c0_18] : memref<16x1xf32, #tpu.memory_space<vmem>>, vector<16x1xf32>
      tpu.vector_store %arg14[%c0_17, %c0_18], %25 {strides = array<i32>} : memref<16x1xf32, #tpu.memory_space<vmem>>, vector<16x1xf32>,
    } else {
    }
    %c1_i32_11 = arith.constant 1 : i32
    %19 = arith.cmpi eq, %arg1, %c1_i32_11 : i32
    %20 = arith.extui %19 : i1 to i32
    %c0_i32_12 = arith.constant 0 : i32
    %21 = arith.cmpi ne, %20, %c0_i32_12 : i32
    scf.if %21 {
      %c0_13 = arith.constant 0 : index
      %c0_14 = arith.constant 0 : index
      %22 = vector.load %arg14[%c0_13, %c0_14] : memref<16x1xf32, #tpu.memory_space<vmem>>, vector<16x1xf32>
      %23 = vector.broadcast %22 : vector<16x1xf32> to vector<16x128xf32>
      %24 = arith.subf %10, %23 : vector<16x128xf32>
      %c0_15 = arith.constant 0 : index
      %c0_16 = arith.constant 0 : index
      %25 = vector.load %arg10[%c0_15, %c0_16] : memref<16x128xf32, #tpu.memory_space<vmem>>, vector<16x128xf32>
      tpu.vector_store %arg10[%c0_15, %c0_16], %24 {strides = array<i32>} : memref<16x128xf32, #tpu.memory_space<vmem>>, vector<16x128xf32>,
    } else {
    }
    return
  }
  func.func @transform_0(%arg0: i32, %arg1: i32, %arg2: i32) -> (i32, i32) {
    %c0_i32 = arith.constant 0 : i32
    %c0_i32_0 = arith.constant 0 : i32
    return %arg0, %c0_i32 : i32, i32
  }
  func.func @transform_1(%arg0: i32, %arg1: i32, %arg2: i32) -> (i32, i32) {
    %c0_i32 = arith.constant 0 : i32
    %c0_i32_0 = arith.constant 0 : i32
    %c0_i32_1 = arith.constant 0 : i32
    return %c0_i32, %c0_i32_0 : i32, i32
  }
  func.func @transform_2(%arg0: i32, %arg1: i32, %arg2: i32) -> (i32, i32) {
    %c0_i32 = arith.constant 0 : i32
    %c0_i32_0 = arith.constant 0 : i32
    %c0_i32_1 = arith.constant 0 : i32
    return %c0_i32, %c0_i32_0 : i32, i32
  }
  func.func @transform_3(%arg0: i32, %arg1: i32, %arg2: i32) -> (i32, i32) {
    %c0_i32 = arith.constant 0 : i32
    %c0_i32_0 = arith.constant 0 : i32
    %c0_i32_1 = arith.constant 0 : i32
    return %c0_i32, %c0_i32_0 : i32, i32
  }
  func.func @transform_4(%arg0: i32, %arg1: i32, %arg2: i32) -> (i32, i32) {
    %c0_i32 = arith.constant 0 : i32
    %c0_i32_0 = arith.constant 0 : i32
    %c0_i32_1 = arith.constant 0 : i32
    return %c0_i32, %c0_i32_0 : i32, i32
  }
  func.func @transform_5(%arg0: i32, %arg1: i32, %arg2: i32) -> (i32, i32) {
    %c0_i32 = arith.constant 0 : i32
    %c0_i32_0 = arith.constant 0 : i32
    return %c0_i32, %arg2 : i32, i32
  }
  func.func @transform_6(%arg0: i32, %arg1: i32, %arg2: i32) -> (i32, i32) {
    %c0_i32 = arith.constant 0 : i32
    %c0_i32_0 = arith.constant 0 : i32
    return %c0_i32, %arg2 : i32, i32
  }
  func.func @transform_7(%arg0: i32, %arg1: i32, %arg2: i32) -> (i32, i32) {
    %0 = arith.muli %arg2, %arg1 : i32
    %c0_i32 = arith.constant 0 : i32
    return %arg0, %0 : i32, i32
  }
}

module attributes {stable_mosaic.version = 11 : i64} {
  func.func @mlp_kernel(%arg0: i32, %arg1: i32, %arg2: i32, %arg3: memref<16x128xbf16, #tpu.memory_space<vmem>>, %arg4: memref<128x128xbf16, #tpu.memory_space<vmem>>, %arg5: memref<1x128xf32, #tpu.memory_space<vmem>>, %arg6: memref<128x128xbf16, #tpu.memory_space<vmem>>, %arg7: memref<1x128xf32, #tpu.memory_space<vmem>>, %arg8: memref<128x128xbf16, #tpu.memory_space<vmem>>, %arg9: memref<1x128xf32, #tpu.memory_space<vmem>>, %arg10: memref<16x128xf32, #tpu.memory_space<vmem>>, %arg11: memref<16x128xbf16, #tpu.memory_space<vmem>>, %arg12: memref<16x1xf32, #tpu.memory_space<vmem>>, %arg13: memref<16x1xf32, #tpu.memory_space<vmem>>, %arg14: memref<16x1xf32, #tpu.memory_space<vmem>>) attributes {dimension_semantics = [#tpu.dimension_semantics<parallel>, #tpu.dimension_semantics<arbitrary>, #tpu.dimension_semantics<arbitrary>], iteration_bounds = array<i64: 1, 2, 1>, scalar_prefetch = 0 : i64, scratch_operands = 4 : i64, tpu.core_type = #tpu.core_type<tc>, window_params = [{transform_indices = @transform_0, window_bounds = array<i64: 16, 128>}, {pipeline_mode = #tpu.pipeline_mode<synchronous>, transform_indices = @transform_1, window_bounds = array<i64: 128, 128>}, {pipeline_mode = #tpu.pipeline_mode<synchronous>, transform_indices = @transform_2, window_bounds = array<i64: 1, 128>}, {pipeline_mode = #tpu.pipeline_mode<synchronous>, transform_indices = @transform_3, window_bounds = array<i64: 128, 128>}, {pipeline_mode = #tpu.pipeline_mode<synchronous>, transform_indices = @transform_4, window_bounds = array<i64: 1, 128>}, {transform_indices = @transform_5, window_bounds = array<i64: 128, 128>}, {transform_indices = @transform_6, window_bounds = array<i64: 1, 128>}, {transform_indices = @transform_7, window_bounds = array<i64: 16, 128>}]} {
    %c0_i32 = arith.constant 0 : i32
    %0 = arith.cmpi eq, %arg1, %c0_i32 : i32
    %c0_i32_0 = arith.constant 0 : i32
    %1 = arith.cmpi eq, %arg2, %c0_i32_0 : i32
    %2 = arith.andi %0, %1 : i1
    %3 = arith.extui %2 : i1 to i32
    %c0_i32_1 = arith.constant 0 : i32
    %4 = arith.cmpi ne, %3, %c0_i32_1 : i32
    scf.if %4 {
      %c0_13 = arith.constant 0 : index
      %c0_14 = arith.constant 0 : index
      %22 = vector.load %arg3[%c0_13, %c0_14] : memref<16x128xbf16, #tpu.memory_space<vmem>>, vector<16x128xbf16>
      %c0_15 = arith.constant 0 : index
      %c0_16 = arith.constant 0 : index
      %23 = vector.load %arg4[%c0_15, %c0_16] : memref<128x128xbf16, #tpu.memory_space<vmem>>, vector<128x128xbf16>
      %cst_17 = arith.constant dense<0.000000e+00> : vector<16x128xf32>
      %24 = tpu.matmul %22, %23, %cst_17 {dimension_numbers = #tpu.dot_dimension_numbers<[1], [0], [0], [1], [0, 0, 1, 1], [], []>} : vector<16x128xbf16>, vector<128x128xbf16>, vector<16x128xf32> -> vector<16x128xf32>
      %c0_18 = arith.constant 0 : index
      %c0_19 = arith.constant 0 : index
      %25 = vector.load %arg5[%c0_18, %c0_19] : memref<1x128xf32, #tpu.memory_space<vmem>>, vector<1x128xf32>
      %26 = vector.broadcast %25 : vector<1x128xf32> to vector<16x128xf32>
      %27 = arith.addf %24, %26 : vector<16x128xf32>
      %cst_20 = arith.constant 0.000000e+00 : f32
      %28 = vector.broadcast %cst_20 : f32 to vector<16x128xf32>
      %29 = arith.maximumf %27, %28 : vector<16x128xf32>
      %30 = arith.truncf %29 : vector<16x128xf32> to vector<16x128xbf16>
      %c0_21 = arith.constant 0 : index
      %c0_22 = arith.constant 0 : index
      %31 = vector.load %arg6[%c0_21, %c0_22] : memref<128x128xbf16, #tpu.memory_space<vmem>>, vector<128x128xbf16>
      %cst_23 = arith.constant dense<0.000000e+00> : vector<16x128xf32>
      %32 = tpu.matmul %30, %31, %cst_23 {dimension_numbers = #tpu.dot_dimension_numbers<[1], [0], [0], [1], [0, 0, 1, 1], [], []>} : vector<16x128xbf16>, vector<128x128xbf16>, vector<16x128xf32> -> vector<16x128xf32>
      %c0_24 = arith.constant 0 : index
      %c0_25 = arith.constant 0 : index
      %33 = vector.load %arg7[%c0_24, %c0_25] : memref<1x128xf32, #tpu.memory_space<vmem>>, vector<1x128xf32>
      %34 = vector.broadcast %33 : vector<1x128xf32> to vector<16x128xf32>
      %35 = arith.addf %32, %34 : vector<16x128xf32>
      %cst_26 = arith.constant 0.000000e+00 : f32
      %36 = vector.broadcast %cst_26 : f32 to vector<16x128xf32>
      %37 = arith.maximumf %35, %36 : vector<16x128xf32>
      %38 = arith.truncf %37 : vector<16x128xf32> to vector<16x128xbf16>
      %c0_27 = arith.constant 0 : index
      %c0_28 = arith.constant 0 : index
      %39 = vector.load %arg11[%c0_27, %c0_28] : memref<16x128xbf16, #tpu.memory_space<vmem>>, vector<16x128xbf16>
      tpu.vector_store %arg11[%c0_27, %c0_28], %38 {strides = array<i32>} : memref<16x128xbf16, #tpu.memory_space<vmem>>, vector<16x128xbf16>,
      %cst_29 = arith.constant 0xFF800000 : f32
      %40 = vector.broadcast %cst_29 : f32 to vector<16x1xf32>
      %c0_30 = arith.constant 0 : index
      %c0_31 = arith.constant 0 : index
      %41 = vector.load %arg12[%c0_30, %c0_31] : memref<16x1xf32, #tpu.memory_space<vmem>>, vector<16x1xf32>
      tpu.vector_store %arg12[%c0_30, %c0_31], %40 {strides = array<i32>} : memref<16x1xf32, #tpu.memory_space<vmem>>, vector<16x1xf32>,
      %cst_32 = arith.constant 0.000000e+00 : f32
      %42 = vector.broadcast %cst_32 : f32 to vector<16x1xf32>
      %c0_33 = arith.constant 0 : index
      %c0_34 = arith.constant 0 : index
      %43 = vector.load %arg13[%c0_33, %c0_34] : memref<16x1xf32, #tpu.memory_space<vmem>>, vector<16x1xf32>
      tpu.vector_store %arg13[%c0_33, %c0_34], %42 {strides = array<i32>} : memref<16x1xf32, #tpu.memory_space<vmem>>, vector<16x1xf32>,
    } else {
    }
    %c0 = arith.constant 0 : index
    %c0_2 = arith.constant 0 : index
    %5 = vector.load %arg11[%c0, %c0_2] : memref<16x128xbf16, #tpu.memory_space<vmem>>, vector<16x128xbf16>
    %c0_3 = arith.constant 0 : index
    %c0_4 = arith.constant 0 : index
    %6 = vector.load %arg8[%c0_3, %c0_4] : memref<128x128xbf16, #tpu.memory_space<vmem>>, vector<128x128xbf16>
    %cst = arith.constant dense<0.000000e+00> : vector<16x128xf32>
    %7 = tpu.matmul %5, %6, %cst {dimension_numbers = #tpu.dot_dimension_numbers<[1], [0], [0], [1], [0, 0, 1, 1], [], []>} : vector<16x128xbf16>, vector<128x128xbf16>, vector<16x128xf32> -> vector<16x128xf32>
    %c0_5 = arith.constant 0 : index
    %c0_6 = arith.constant 0 : index
    %8 = vector.load %arg9[%c0_5, %c0_6] : memref<1x128xf32, #tpu.memory_space<vmem>>, vector<1x128xf32>
    %9 = vector.broadcast %8 : vector<1x128xf32> to vector<16x128xf32>
    %10 = arith.addf %7, %9 : vector<16x128xf32>
    %c0_i32_7 = arith.constant 0 : i32
    %11 = arith.cmpi eq, %arg1, %c0_i32_7 : i32
    %12 = arith.extui %11 : i1 to i32
    %c0_i32_8 = arith.constant 0 : i32
    %13 = arith.cmpi ne, %12, %c0_i32_8 : i32
    scf.if %13 {
      %c0_13 = arith.constant 0 : index
      %c0_14 = arith.constant 0 : index
      %22 = vector.load %arg12[%c0_13, %c0_14] : memref<16x1xf32, #tpu.memory_space<vmem>>, vector<16x1xf32>
      %cst_15 = arith.constant dense<0xFF800000> : vector<16xf32>
      %23 = vector.multi_reduction <maximumf>, %10, %cst_15 [1] : vector<16x128xf32> to vector<16xf32>
      %24 = vector.shape_cast %23 : vector<16xf32> to vector<16x1xf32>
      %25 = arith.maximumf %22, %24 : vector<16x1xf32>
      %c0_16 = arith.constant 0 : index
      %c0_17 = arith.constant 0 : index
      %26 = vector.load %arg13[%c0_16, %c0_17] : memref<16x1xf32, #tpu.memory_space<vmem>>, vector<16x1xf32>
      %c0_18 = arith.constant 0 : index
      %c0_19 = arith.constant 0 : index
      %27 = vector.load %arg12[%c0_18, %c0_19] : memref<16x1xf32, #tpu.memory_space<vmem>>, vector<16x1xf32>
      %28 = arith.subf %27, %25 : vector<16x1xf32>
      %29 = math.exp %28 : vector<16x1xf32>
      %30 = arith.mulf %26, %29 : vector<16x1xf32>
      %31 = vector.broadcast %25 : vector<16x1xf32> to vector<16x128xf32>
      %32 = arith.subf %10, %31 : vector<16x128xf32>
      %33 = math.exp %32 : vector<16x128xf32>
      %cst_20 = arith.constant dense<0.000000e+00> : vector<16xf32>
      %34 = vector.multi_reduction <add>, %33, %cst_20 [1] : vector<16x128xf32> to vector<16xf32>
      %35 = vector.shape_cast %34 : vector<16xf32> to vector<16x1xf32>
      %36 = arith.addf %30, %35 : vector<16x1xf32>
      %c0_21 = arith.constant 0 : index
      %c0_22 = arith.constant 0 : index
      %37 = vector.load %arg13[%c0_21, %c0_22] : memref<16x1xf32, #tpu.memory_space<vmem>>, vector<16x1xf32>
      tpu.vector_store %arg13[%c0_21, %c0_22], %36 {strides = array<i32>} : memref<16x1xf32, #tpu.memory_space<vmem>>, vector<16x1xf32>,
      %c0_23 = arith.constant 0 : index
      %c0_24 = arith.constant 0 : index
      %38 = vector.load %arg12[%c0_23, %c0_24] : memref<16x1xf32, #tpu.memory_space<vmem>>, vector<16x1xf32>
      tpu.vector_store %arg12[%c0_23, %c0_24], %25 {strides = array<i32>} : memref<16x1xf32, #tpu.memory_space<vmem>>, vector<16x1xf32>,
    } else {
    }
    %c1_i32 = arith.constant 1 : i32
    %14 = arith.cmpi eq, %arg1, %c1_i32 : i32
    %c0_i32_9 = arith.constant 0 : i32
    %15 = arith.cmpi eq, %arg2, %c0_i32_9 : i32
    %16 = arith.andi %14, %15 : i1
    %17 = arith.extui %16 : i1 to i32
    %c0_i32_10 = arith.constant 0 : i32
    %18 = arith.cmpi ne, %17, %c0_i32_10 : i32
    scf.if %18 {
      %c0_13 = arith.constant 0 : index
      %c0_14 = arith.constant 0 : index
      %22 = vector.load %arg12[%c0_13, %c0_14] : memref<16x1xf32, #tpu.memory_space<vmem>>, vector<16x1xf32>
      %c0_15 = arith.constant 0 : index
      %c0_16 = arith.constant 0 : index
      %23 = vector.load %arg13[%c0_15, %c0_16] : memref<16x1xf32, #tpu.memory_space<vmem>>, vector<16x1xf32>
      %24 = math.log %23 : vector<16x1xf32>
      %25 = arith.addf %22, %24 : vector<16x1xf32>
      %c0_17 = arith.constant 0 : index
      %c0_18 = arith.constant 0 : index
      %26 = vector.load %arg14[%c0_17, %c0_18] : memref<16x1xf32, #tpu.memory_space<vmem>>, vector<16x1xf32>
      tpu.vector_store %arg14[%c0_17, %c0_18], %25 {strides = array<i32>} : memref<16x1xf32, #tpu.memory_space<vmem>>, vector<16x1xf32>,
    } else {
    }
    %c1_i32_11 = arith.constant 1 : i32
    %19 = arith.cmpi eq, %arg1, %c1_i32_11 : i32
    %20 = arith.extui %19 : i1 to i32
    %c0_i32_12 = arith.constant 0 : i32
    %21 = arith.cmpi ne, %20, %c0_i32_12 : i32
    scf.if %21 {
      %c0_13 = arith.constant 0 : index
      %c0_14 = arith.constant 0 : index
      %22 = vector.load %arg14[%c0_13, %c0_14] : memref<16x1xf32, #tpu.memory_space<vmem>>, vector<16x1xf32>
      %23 = vector.broadcast %22 : vector<16x1xf32> to vector<16x128xf32>
      %24 = arith.subf %10, %23 : vector<16x128xf32>
      %c0_15 = arith.constant 0 : index
      %c0_16 = arith.constant 0 : index
      %25 = vector.load %arg10[%c0_15, %c0_16] : memref<16x128xf32, #tpu.memory_space<vmem>>, vector<16x128xf32>
      tpu.vector_store %arg10[%c0_15, %c0_16], %24 {strides = array<i32>} : memref<16x128xf32, #tpu.memory_space<vmem>>, vector<16x128xf32>,
    } else {
    }
    return
  }
  func.func @transform_0(%arg0: i32, %arg1: i32, %arg2: i32) -> (i32, i32) {
    %c0_i32 = arith.constant 0 : i32
    %c0_i32_0 = arith.constant 0 : i32
    return %arg0, %c0_i32 : i32, i32
  }
  func.func @transform_1(%arg0: i32, %arg1: i32, %arg2: i32) -> (i32, i32) {
    %c0_i32 = arith.constant 0 : i32
    %c0_i32_0 = arith.constant 0 : i32
    %c0_i32_1 = arith.constant 0 : i32
    return %c0_i32, %c0_i32_0 : i32, i32
  }
  func.func @transform_2(%arg0: i32, %arg1: i32, %arg2: i32) -> (i32, i32) {
    %c0_i32 = arith.constant 0 : i32
    %c0_i32_0 = arith.constant 0 : i32
    %c0_i32_1 = arith.constant 0 : i32
    return %c0_i32, %c0_i32_0 : i32, i32
  }
  func.func @transform_3(%arg0: i32, %arg1: i32, %arg2: i32) -> (i32, i32) {
    %c0_i32 = arith.constant 0 : i32
    %c0_i32_0 = arith.constant 0 : i32
    %c0_i32_1 = arith.constant 0 : i32
    return %c0_i32, %c0_i32_0 : i32, i32
  }
  func.func @transform_4(%arg0: i32, %arg1: i32, %arg2: i32) -> (i32, i32) {
    %c0_i32 = arith.constant 0 : i32
    %c0_i32_0 = arith.constant 0 : i32
    %c0_i32_1 = arith.constant 0 : i32
    return %c0_i32, %c0_i32_0 : i32, i32
  }
  func.func @transform_5(%arg0: i32, %arg1: i32, %arg2: i32) -> (i32, i32) {
    %c0_i32 = arith.constant 0 : i32
    %c0_i32_0 = arith.constant 0 : i32
    return %c0_i32, %arg2 : i32, i32
  }
  func.func @transform_6(%arg0: i32, %arg1: i32, %arg2: i32) -> (i32, i32) {
    %c0_i32 = arith.constant 0 : i32
    %c0_i32_0 = arith.constant 0 : i32
    return %c0_i32, %arg2 : i32, i32
  }
  func.func @transform_7(%arg0: i32, %arg1: i32, %arg2: i32) -> (i32, i32) {
    %0 = arith.muli %arg2, %arg1 : i32
    %c0_i32 = arith.constant 0 : i32
    return %arg0, %0 : i32, i32
  }
}

</mosaic_0001>

<llo_original>
// kernel: tpu_custom_call.1
$region0: #{tpu_custom_call.1}
  #allocation0 [shape = 'u32[]', space=smem, size = 0x4, offset = 0x4, fixed_abs, tag = 'smem constant byte address 0x4 - core index']
  #allocation1 [shape = 'u32[72,128]{1,0:T(1,128)}', space=vmem, size = 0x9000, scoped, tag = 'internal scratch']
  #allocation2 [shape = 'bf16[16,128]{1,0:T(8,128)(2,1)}', space=vmem, size = 0x1000, scoped, tag = 'scratch operand']
  #allocation3 [shape = 'f32[16,1]{1,0:T(8,128)}', space=vmem, size = 0x2000, scoped, tag = 'scratch operand']
  #allocation4 [shape = 'f32[16,1]{1,0:T(8,128)}', space=vmem, size = 0x2000, scoped, tag = 'scratch operand']
  #allocation5 [shape = 'f32[16,1]{1,0:T(8,128)}', space=vmem, size = 0x2000, scoped, tag = 'scratch operand']
  %s0 = inlined_call_operand.hbm [shape: bf16[16,128], index: 0, kind: input, shape index: {}]
  %s1 = inlined_call_operand.hbm [shape: bf16[128,128], index: 1, kind: input, shape index: {}]
  %s2 = inlined_call_operand.vmem [shape: f32[1,128], index: 2, kind: input, shape index: {}]
  %s3 = inlined_call_operand.hbm [shape: bf16[128,128], index: 3, kind: input, shape index: {}]
  %s4 = inlined_call_operand.vmem [shape: f32[1,128], index: 4, kind: input, shape index: {}]
  %s5 = inlined_call_operand.hbm [shape: bf16[128,128], index: 5, kind: input, shape index: {}]
  %s6 = inlined_call_operand.vmem [shape: f32[1,128], index: 6, kind: input, shape index: {}]
  %s7 = inlined_call_operand.hbm [shape: f32[16,128], index: 7, kind: output, shape index: {}]
  %s8 = sld [smem:[#allocation0]]
  $region93: #{tpu_custom_call.1} parent=0
    _
  %s10 = ssub.s32 1, %s8
  %s11 = scalar_select 0, %s10, %s8
  $region1: #{tpu_custom_call.1} parent=0
    #allocation6 [shape = 'u8[4096]{0}', space=vmem, size = 0x1000, scoped, tag = 'input window, operand 0, single buffered']
    #allocation7 [shape = 's32[2]{0}', space=sflag, size = 0x8, scoped, tag = 'scoped memory for tpu_custom_call.1']
    #allocation8 [shape = 's32[2]{0}', space=sflag, size = 0x8, scoped, tag = 'scoped memory for tpu_custom_call.1']
    #allocation9 [shape = 'u8[32768]{0}', space=vmem, size = 0x8000, scoped, tag = 'input window, operand 1, single buffered']
    #allocation10 [shape = 's32[1]{0}', space=sflag, size = 0x4, scoped, tag = 'scoped memory for tpu_custom_call.1']
    #allocation11 [shape = 'u8[32768]{0}', space=vmem, size = 0x8000, scoped, tag = 'input window, operand 3, single buffered']
    #allocation12 [shape = 'u8[32768]{0}', space=vmem, size = 0x8000, scoped, tag = 'input window, operand 5, single buffered']
    #allocation13 [shape = 's32[1]{0}', space=sflag, size = 0x4, scoped, tag = 'scoped memory for tpu_custom_call.1']
    #allocation14 [shape = 'u8[16384]{0}', space=vmem, size = 0x4000, scoped, tag = 'output window, operand 0']
    %12 = vsyncpa [#allocation7], 0
    %13 = vsyncpa [#allocation10], 0
    %14 = vsyncpa [#allocation13], 0
    %15 = vsyncpa [#allocation8], 0
    %s16 = scalar_lea.sflag [#allocation8], 1
    %17 = vsyncpa %s16, 0
    loop: start=0, step=1, limit=4
    $region2: #{tpu_custom_call.1} parent=1 // loop_pre_header
      _
    $region3: #{tpu_custom_call.1} parent=1 // loop_header
      %s19 = sphi 0, %s23
      %p20 = scmp.ge.s32.totalorder %s19, 4
      %s26 = sphi 0, %s45
      %s27 = sphi 0, %s41
      %s28 = sphi 0, %s37
      %s29 = sphi 0, %s26
      %s30 = sphi 0, %s27
      %s31 = sphi 0, %s28
      %s32 = sphi 0, %s29
      %s33 = sphi 0, %s30
      %s34 = sphi 0, %s31
      %s48 = sphi 0, %s50
      %s51 = sphi 0, %s48
      %s52 = sphi 0, %s51
      %s68 = sphi 0, %s52
      %s72 = sphi 0, %s72
      %s74 = sphi 0, %s72
      %s75 = sphi 0, %s74
      %s89 = sphi 0, %s75
      %s93 = sphi 0, %s93
      %s95 = sphi 0, %s93
      %s96 = sphi 0, %s95
      %s110 = sphi 0, %s96
      %s114 = sphi 0, %s114
      %s116 = sphi 0, %s114
      %s117 = sphi 0, %s116
      %s131 = sphi 0, %s117
      %s135 = sphi 0, %s135
      %s137 = sphi 0, %s135
      %s138 = sphi 0, %s137
      %s152 = sphi 0, %s138
      %s158 = sphi 0, %s160
      %s161 = sphi 0, %s158
      %s162 = sphi 0, %s161
      %s178 = sphi 0, %s162
      %s184 = sphi 0, %s186
      %s187 = sphi 0, %s184
      %s188 = sphi 0, %s187
      %s204 = sphi 0, %s188
      %s214 = sphi 0, %s216
      %s217 = sphi 0, %s214
      %s218 = sphi 0, %s217
      %s234 = sphi 0, %s218
    $region4: #{tpu_custom_call.1} parent=1 // loop_header_branch
      %22 = sbr.rel (%p20) target = $region8
    $region5: #{tpu_custom_call.1} parent=1 // loop_body
      %s24 = ssub.s32 %s19, 1
      %s25 = ssub.s32 %s19, 2
      %s35 = sadd.s32 1, %s28
      %p36 = scmp.ge.s32.totalorder %s35, 1
      %s37 = scalar_select %p36, 0, %s35
      %s38 = sadd.s32 1, %s27
      %s39 = scalar_select %p36, %s38, %s27
      %p40 = scmp.ge.s32.totalorder %s39, 2
      %s41 = scalar_select %p40, 0, %s39
      %s42 = sadd.s32 1, %s26
      %s43 = scalar_select %p40, %s42, %s26
      %p44 = scmp.ge.s32.totalorder %s43, 1
      %s45 = scalar_select %p44, 0, %s43
      %s46 = ssub.s32 %s26, %s45
      %p47 = scmp.eq.s32.totalorder %s46, 0
      %s49 = sadd.s32 %s48, 1
      %s50 = scalar_select %p47, %s48, %s49
      %p53 = pneg %p47
      %p54 = scmp.eq.s32.totalorder %s19, 1
      %p55 = por %p53, %p54
      %p56 = scmp.ne.s32.totalorder %s48, %s51
      %p57 = scmp.eq.s32.totalorder %s19, 0
      %p58 = por %p56, %p57
      %p59 = scmp.ne.s32.totalorder %s48, %s51
      %p60 = scmp.eq.s32.totalorder %s24, 1
      %p61 = por %p59, %p60
      %p62 = scmp.ne.s32.totalorder %s51, %s52
      %p63 = scmp.eq.s32.totalorder %s24, 0
      %p64 = por %p62, %p63
      %p65 = scmp.ne.s32.totalorder %s51, %s52
      %p66 = scmp.eq.s32.totalorder %s25, 1
      %p67 = por %p65, %p66
      %p69 = scmp.ne.s32.totalorder %s52, %s68
      %p70 = scmp.eq.s32.totalorder %s25, 0
      %p71 = por %p69, %p70
      %s73 = sadd.s32 %s72, 1
      %p76 = scmp.eq.s32.totalorder %s19, 1
      %p77 = scmp.ne.s32.totalorder %s72, %s74
      %p78 = scmp.eq.s32.totalorder %s19, 0
      %p79 = por %p77, %p78
      %p80 = scmp.ne.s32.totalorder %s72, %s74
      %p81 = scmp.eq.s32.totalorder %s24, 1
      %p82 = por %p80, %p81
      %p83 = scmp.ne.s32.totalorder %s74, %s75
      %p84 = scmp.eq.s32.totalorder %s24, 0
      %p85 = por %p83, %p84
      %p86 = scmp.ne.s32.totalorder %s74, %s75
      %p87 = scmp.eq.s32.totalorder %s25, 1
      %p88 = por %p86, %p87
      %p90 = scmp.ne.s32.totalorder %s75, %s89
      %p91 = scmp.eq.s32.totalorder %s25, 0
      %p92 = por %p90, %p91
      %s94 = sadd.s32 %s93, 1
      %p97 = scmp.eq.s32.totalorder %s19, 1
      %p98 = scmp.ne.s32.totalorder %s93, %s95
      %p99 = scmp.eq.s32.totalorder %s19, 0
      %p100 = por %p98, %p99
      %p101 = scmp.ne.s32.totalorder %s93, %s95
      %p102 = scmp.eq.s32.totalorder %s24, 1
      %p103 = por %p101, %p102
      %p104 = scmp.ne.s32.totalorder %s95, %s96
      %p105 = scmp.eq.s32.totalorder %s24, 0
      %p106 = por %p104, %p105
      %p107 = scmp.ne.s32.totalorder %s95, %s96
      %p108 = scmp.eq.s32.totalorder %s25, 1
      %p109 = por %p107, %p108
      %p111 = scmp.ne.s32.totalorder %s96, %s110
      %p112 = scmp.eq.s32.totalorder %s25, 0
      %p113 = por %p111, %p112
      %s115 = sadd.s32 %s114, 1
      %p118 = scmp.eq.s32.totalorder %s19, 1
      %p119 = scmp.ne.s32.totalorder %s114, %s116
      %p120 = scmp.eq.s32.totalorder %s19, 0
      %p121 = por %p119, %p120
      %p122 = scmp.ne.s32.totalorder %s114, %s116
      %p123 = scmp.eq.s32.totalorder %s24, 1
      %p124 = por %p122, %p123
      %p125 = scmp.ne.s32.totalorder %s116, %s117
      %p126 = scmp.eq.s32.totalorder %s24, 0
      %p127 = por %p125, %p126
      %p128 = scmp.ne.s32.totalorder %s116, %s117
      %p129 = scmp.eq.s32.totalorder %s25, 1
      %p130 = por %p128, %p129
      %p132 = scmp.ne.s32.totalorder %s117, %s131
      %p133 = scmp.eq.s32.totalorder %s25, 0
      %p134 = por %p132, %p133
      %s136 = sadd.s32 %s135, 1
      %p139 = scmp.eq.s32.totalorder %s19, 1
      %p140 = scmp.ne.s32.totalorder %s135, %s137
      %p141 = scmp.eq.s32.totalorder %s19, 0
      %p142 = por %p140, %p141
      %p143 = scmp.ne.s32.totalorder %s135, %s137
      %p144 = scmp.eq.s32.totalorder %s24, 1
      %p145 = por %p143, %p144
      %p146 = scmp.ne.s32.totalorder %s137, %s138
      %p147 = scmp.eq.s32.totalorder %s24, 0
      %p148 = por %p146, %p147
      %p149 = scmp.ne.s32.totalorder %s137, %s138
      %p150 = scmp.eq.s32.totalorder %s25, 1
      %p151 = por %p149, %p150
      %p153 = scmp.ne.s32.totalorder %s138, %s152
      %p154 = scmp.eq.s32.totalorder %s25, 0
      %p155 = por %p153, %p154
      %s156 = ssub.s32 %s28, %s37
      %p157 = scmp.eq.s32.totalorder %s156, 0
      %s159 = sadd.s32 %s158, 1
      %s160 = scalar_select %p157, %s158, %s159
      %p163 = pneg %p157
      %p164 = scmp.eq.s32.totalorder %s19, 1
      %p165 = por %p163, %p164
      %p166 = scmp.ne.s32.totalorder %s158, %s161
      %p167 = scmp.eq.s32.totalorder %s19, 0
      %p168 = por %p166, %p167
      %p169 = scmp.ne.s32.totalorder %s158, %s161
      %p170 = scmp.eq.s32.totalorder %s24, 1
      %p171 = por %p169, %p170
      %p172 = scmp.ne.s32.totalorder %s161, %s162
      %p173 = scmp.eq.s32.totalorder %s24, 0
      %p174 = por %p172, %p173
      %p175 = scmp.ne.s32.totalorder %s161, %s162
      %p176 = scmp.eq.s32.totalorder %s25, 1
      %p177 = por %p175, %p176
      %p179 = scmp.ne.s32.totalorder %s162, %s178
      %p180 = scmp.eq.s32.totalorder %s25, 0
      %p181 = por %p179, %p180
      %s182 = ssub.s32 %s28, %s37
      %p183 = scmp.eq.s32.totalorder %s182, 0
      %s185 = sadd.s32 %s184, 1
      %s186 = scalar_select %p183, %s184, %s185
      %p189 = pneg %p183
      %p190 = scmp.eq.s32.totalorder %s19, 1
      %p191 = por %p189, %p190
      %p192 = scmp.ne.s32.totalorder %s184, %s187
      %p193 = scmp.eq.s32.totalorder %s19, 0
      %p194 = por %p192, %p193
      %p195 = scmp.ne.s32.totalorder %s184, %s187
      %p196 = scmp.eq.s32.totalorder %s24, 1
      %p197 = por %p195, %p196
      %p198 = scmp.ne.s32.totalorder %s187, %s188
      %p199 = scmp.eq.s32.totalorder %s24, 0
      %p200 = por %p198, %p199
      %p201 = scmp.ne.s32.totalorder %s187, %s188
      %p202 = scmp.eq.s32.totalorder %s25, 1
      %p203 = por %p201, %p202
      %p205 = scmp.ne.s32.totalorder %s188, %s204
      %p206 = scmp.eq.s32.totalorder %s25, 0
      %p207 = por %p205, %p206
      %s208 = smul.u32 %s28, %s27
      %s209 = smul.u32 %s37, %s41
      %s210 = ssub.s32 %s26, %s45
      %s211 = ssub.s32 %s208, %s209
      %s212 = sor.u32 %s210, %s211
      %p213 = scmp.eq.s32.totalorder %s212, 0
      %s215 = sadd.s32 %s214, 1
      %s216 = scalar_select %p213, %s214, %s215
      %p219 = pneg %p213
      %p220 = scmp.eq.s32.totalorder %s19, 1
      %p221 = por %p219, %p220
      %p222 = scmp.ne.s32.totalorder %s214, %s217
      %p223 = scmp.eq.s32.totalorder %s19, 0
      %p224 = por %p222, %p223
      %p225 = scmp.ne.s32.totalorder %s214, %s217
      %p226 = scmp.eq.s32.totalorder %s24, 1
      %p227 = por %p225, %p226
      %p228 = scmp.ne.s32.totalorder %s217, %s218
      %p229 = scmp.eq.s32.totalorder %s24, 0
      %p230 = por %p228, %p229
      %p231 = scmp.ne.s32.totalorder %s217, %s218
      %p232 = scmp.eq.s32.totalorder %s25, 1
      %p233 = por %p231, %p232
      %p235 = scmp.ne.s32.totalorder %s218, %s234
      %p236 = scmp.eq.s32.totalorder %s25, 0
      %p237 = por %p235, %p236
      %p238 = scmp.le.s32.totalorder 1, %s19
      %p239 = scmp.lt.s32.totalorder %s19, 3
      %p240 = pnand %p238, %p239
      %p241 = pneg %p240
      // Predicated region
      $region9: #{tpu_custom_call.1} parent=5 // pred_check
        _
      $region10: #{tpu_custom_call.1} parent=5 // pred_check_branch
        %243 = sbr.rel (%p240) target = $region12
      $region11: #{tpu_custom_call.1} parent=5 // pred_region
        %s244 = ssub.s32 %s19, 1
        // Predicated region
        $region13: #{tpu_custom_call.1} parent=11 // pred_check
          %p245 = pneg %p64
        $region14: #{tpu_custom_call.1} parent=11 // pred_check_branch
          %247 = sbr.rel (%p245) target = $region16
        $region15: #{tpu_custom_call.1} parent=11 // pred_region
          %s248 = smul.u32 2, %s29
          %250 = vsyncadd [#allocation7], 0
          %s251 = smul.addr %s248, 4
          %s252 = scalar_lea.hbm %s0, %s251
          %s253 = sshll.u32 %s252, 4
          %s254 = int_to_ptr.hbm [resolvable:$true] %s253
          %s255 = sshll.u32 [#allocation6], 4
          %s256 = int_to_ptr.vmem [resolvable:$true] %s255
          %261 = dma.hbm_to_vmem [thread:$0]  %s254, 128, %s256, [#allocation7], 64, 64, 4
        $region16: #{tpu_custom_call.1} parent=11 // pred_fallthru
          _
        // Predicated region
        $region17: #{tpu_custom_call.1} parent=11 // pred_check
          %p262 = pneg %p85
        $region18: #{tpu_custom_call.1} parent=11 // pred_check_branch
          %264 = sbr.rel (%p262) target = $region20
        $region19: #{tpu_custom_call.1} parent=11 // pred_region
          %266 = vsyncadd [#allocation10], 0
          %s267 = sshll.u32 %s1, 4
          %s268 = int_to_ptr.hbm [resolvable:$true] %s267
          %s269 = sshll.u32 [#allocation9], 4
          %s270 = int_to_ptr.vmem [resolvable:$true] %s269
          %275 = dma.hbm_to_vmem [thread:$0]  %s268, 1024, %s270, [#allocation10], 64, 64, 4
        $region20: #{tpu_custom_call.1} parent=11 // pred_fallthru
          _
        // Predicated region
        $region21: #{tpu_custom_call.1} parent=11 // pred_check
          %p276 = pneg %p106
        $region22: #{tpu_custom_call.1} parent=11 // pred_check_branch
          %278 = sbr.rel (%p276) target = $region24
        $region23: #{tpu_custom_call.1} parent=11 // pred_region
          _
        $region24: #{tpu_custom_call.1} parent=11 // pred_fallthru
          _
        // Predicated region
        $region25: #{tpu_custom_call.1} parent=11 // pred_check
          %p279 = pneg %p127
        $region26: #{tpu_custom_call.1} parent=11 // pred_check_branch
          %281 = sbr.rel (%p279) target = $region28
        $region27: #{tpu_custom_call.1} parent=11 // pred_region
          %283 = vsyncadd [#allocation10], 0
          %s284 = sshll.u32 %s3, 4
          %s285 = int_to_ptr.hbm [resolvable:$true] %s284
          %s286 = sshll.u32 [#allocation11], 4
          %s287 = int_to_ptr.vmem [resolvable:$true] %s286
          %292 = dma.hbm_to_vmem [thread:$0]  %s285, 1024, %s287, [#allocation10], 64, 64, 4
        $region28: #{tpu_custom_call.1} parent=11 // pred_fallthru
          _
        // Predicated region
        $region29: #{tpu_custom_call.1} parent=11 // pred_check
          %p293 = pneg %p148
        $region30: #{tpu_custom_call.1} parent=11 // pred_check_branch
          %295 = sbr.rel (%p293) target = $region32
        $region31: #{tpu_custom_call.1} parent=11 // pred_region
          _
        $region32: #{tpu_custom_call.1} parent=11 // pred_fallthru
          _
        // Predicated region
        $region33: #{tpu_custom_call.1} parent=11 // pred_check
          %p296 = pneg %p174
        $region34: #{tpu_custom_call.1} parent=11 // pred_check_branch
          %298 = sbr.rel (%p296) target = $region36
        $region35: #{tpu_custom_call.1} parent=11 // pred_region
          %300 = vsyncadd [#allocation13], 0
          %s301 = smul.addr %s31, 4
          %s302 = scalar_lea.hbm %s5, %s301
          %s303 = sshll.u32 %s302, 4
          %s304 = int_to_ptr.hbm [resolvable:$true] %s303
          %s305 = sshll.u32 [#allocation12], 4
          %s306 = int_to_ptr.vmem [resolvable:$true] %s305
          %311 = dma.hbm_to_vmem [thread:$0]  %s304, 1024, %s306, [#allocation13], 64, 64, 4
        $region36: #{tpu_custom_call.1} parent=11 // pred_fallthru
          _
        // Predicated region
        $region37: #{tpu_custom_call.1} parent=11 // pred_check
          %p312 = pneg %p200
        $region38: #{tpu_custom_call.1} parent=11 // pred_check_branch
          %314 = sbr.rel (%p312) target = $region40
        $region39: #{tpu_custom_call.1} parent=11 // pred_region
          %p315 = scmp.lt.s32.totalorder %s31, 0
          %s316 = scalar_select %p315, %s31, 0
          %s317 = scalar_lea.vmem %s6, %s316
        $region40: #{tpu_custom_call.1} parent=11 // pred_fallthru
          _
      $region12: #{tpu_custom_call.1} parent=5 // pred_fallthru
        _
      %p318 = scmp.lt.s32.totalorder %s19, 2
      // Predicated region
      $region41: #{tpu_custom_call.1} parent=5 // pred_check
        %p319 = pneg %p318
      $region42: #{tpu_custom_call.1} parent=5 // pred_check_branch
        %321 = sbr.rel (%p319) target = $region44
      $region43: #{tpu_custom_call.1} parent=5 // pred_region
        _
      $region44: #{tpu_custom_call.1} parent=5 // pred_fallthru
        _
      %p322 = scmp.le.s32.totalorder 1, %s19
      %p323 = scmp.lt.s32.totalorder %s19, 3
      %p324 = pnand %p322, %p323
      %p325 = pneg %p324
      // Predicated region
      $region45: #{tpu_custom_call.1} parent=5 // pred_check
        _
      $region46: #{tpu_custom_call.1} parent=5 // pred_check_branch
        %327 = sbr.rel (%p324) target = $region48
      $region47: #{tpu_custom_call.1} parent=5 // pred_region
        %s328 = ssub.s32 %s19, 1
        // Predicated region
        $region49: #{tpu_custom_call.1} parent=47 // pred_check
          %p329 = pneg %p64
        $region50: #{tpu_custom_call.1} parent=47 // pred_check_branch
          %331 = sbr.rel (%p329) target = $region52
        $region51: #{tpu_custom_call.1} parent=47 // pred_region
          %333 = dma.done [#allocation7], 128
        $region52: #{tpu_custom_call.1} parent=47 // pred_fallthru
          _
        // Predicated region
        $region53: #{tpu_custom_call.1} parent=47 // pred_check
          %p334 = pneg %p85
        $region54: #{tpu_custom_call.1} parent=47 // pred_check_branch
          %336 = sbr.rel (%p334) target = $region56
        $region55: #{tpu_custom_call.1} parent=47 // pred_region
          %338 = dma.done [#allocation10], 1024
        $region56: #{tpu_custom_call.1} parent=47 // pred_fallthru
          _
        // Predicated region
        $region57: #{tpu_custom_call.1} parent=47 // pred_check
          %p339 = pneg %p127
        $region58: #{tpu_custom_call.1} parent=47 // pred_check_branch
          %341 = sbr.rel (%p339) target = $region60
        $region59: #{tpu_custom_call.1} parent=47 // pred_region
          %343 = dma.done [#allocation10], 1024
        $region60: #{tpu_custom_call.1} parent=47 // pred_fallthru
          _
        // Predicated region
        $region61: #{tpu_custom_call.1} parent=47 // pred_check
          %p344 = pneg %p174
        $region62: #{tpu_custom_call.1} parent=47 // pred_check_branch
          %346 = sbr.rel (%p344) target = $region64
        $region63: #{tpu_custom_call.1} parent=47 // pred_region
          %348 = dma.done [#allocation13], 1024
        $region64: #{tpu_custom_call.1} parent=47 // pred_fallthru
          _
        %p349 = pneg %p64
        %p350 = pneg %p61
        %p351 = pneg %p85
        %p352 = pneg %p82
        %p353 = pneg %p106
        %p354 = pneg %p103
        %p355 = pneg %p127
        %p356 = pneg %p124
        %p357 = pneg %p148
        %p358 = pneg %p145
        %p359 = pneg %p174
        %p360 = pneg %p171
        %p361 = scmp.lt.s32.totalorder %s31, 0
        %s362 = scalar_select %p361, %s31, 0
        %s363 = scalar_lea.vmem %s6, %s362
        %p364 = pneg %p200
        %p365 = pneg %p197
        %p366 = pneg %p230
        %p367 = pneg %p227
        %s368 = sand.u32 %s217, 1
        %s369 = scalar_lea.sflag [#allocation8], %s368
        %s370 = sand.u32 %s217, 1
        %s371 = smul.addr %s370, 16
        %s372 = scalar_lea.vmem [#allocation14], %s371
        %s373 = smul.u32 2, %s29
        %p374 = scmp.lt.s32.totalorder %s31, 0
        %s375 = scalar_select %p374, %s31, 0
        %s376 = scalar_lea.vmem %s6, %s375
        %s377 = smul.u32 %s31, %s30
        %s378 = smul.u32 2, %s29
        %p379 = scmp.eq.s32.totalorder %s30, 0
        %p380 = scmp.eq.s32.totalorder %s31, 0
        %p381 = pnand %p379, %p380
        %p382 = pneg %p381
        // Predicated region
        $region65: #{tpu_custom_call.1} parent=47 // pred_check
          _
        $region66: #{tpu_custom_call.1} parent=47 // pred_check_branch
          %384 = sbr.rel (%p381) target = $region68
        $region67: #{tpu_custom_call.1} parent=47 // pred_region
          %v385 = vld [vmem:[#allocation6] sm:$0xf]
          %v386 = vld [vmem:[#allocation6 + $0x4] sm:$0xf]
          %v387 = vld [vmem:[#allocation9] sm:$0xf]
          %v388 = vld [vmem:[#allocation9 + $0x4] sm:$0xf]
          %v389 = vld [vmem:[#allocation9 + $0x8] sm:$0xf]
          %v390 = vld [vmem:[#allocation9 + $0xc] sm:$0xf]
          %v391 = vld [vmem:[#allocation9 + $0x10] sm:$0xf]
          %v392 = vld [vmem:[#allocation9 + $0x14] sm:$0xf]
          %v393 = vld [vmem:[#allocation9 + $0x18] sm:$0xf]
          %v394 = vld [vmem:[#allocation9 + $0x1c] sm:$0xf]
          %v395 = vld [vmem:[#allocation9 + $0x20] sm:$0xf]
          %v396 = vld [vmem:[#allocation9 + $0x24] sm:$0xf]
          %v397 = vld [vmem:[#allocation9 + $0x28] sm:$0xf]
          %v398 = vld [vmem:[#allocation9 + $0x2c] sm:$0xf]
          %v399 = vld [vmem:[#allocation9 + $0x30] sm:$0xf]
          %v400 = vld [vmem:[#allocation9 + $0x34] sm:$0xf]
          %v401 = vld [vmem:[#allocation9 + $0x38] sm:$0xf]
          %v402 = vld [vmem:[#allocation9 + $0x3c] sm:$0xf]
          %v403 = vld [vmem:[%s2] sm:$0x1]
          %v405 = vperm.slane %v403, 0
          %v409 = vunpack.c.l.b16 %v385
          %v410 = vunpack.c.l.b16 %v386
          %v411 = vpack.c.b16 %v410, %v409
          %v429 = vunpack.c.l.b16 %v387
          %v430 = vunpack.c.l.b16 %v388
          %v431 = vunpack.c.l.b16 %v389
          %v432 = vunpack.c.l.b16 %v390
          %v433 = vunpack.c.l.b16 %v391
          %v434 = vunpack.c.l.b16 %v392
          %v435 = vunpack.c.l.b16 %v393
          %v436 = vunpack.c.l.b16 %v394
          %v437 = vunpack.c.l.b16 %v395
          %v438 = vunpack.c.l.b16 %v396
          %v439 = vunpack.c.l.b16 %v397
          %v440 = vunpack.c.l.b16 %v398
          %v441 = vunpack.c.l.b16 %v399
          %v442 = vunpack.c.l.b16 %v400
          %v443 = vunpack.c.l.b16 %v401
          %v444 = vunpack.c.l.b16 %v402
          %v445 = vpack.c.b16 %v430, %v429
          %v446 = vpack.c.b16 %v432, %v431
          %v447 = vpack.c.b16 %v434, %v433
          %v448 = vpack.c.b16 %v436, %v435
          %v449 = vpack.c.b16 %v438, %v437
          %v450 = vpack.c.b16 %v440, %v439
          %v451 = vpack.c.b16 %v442, %v441
          %v452 = vpack.c.b16 %v444, %v443
          %461 = vmatpush.bf16.msra.mxu0 %v452
          %462 = vmatpush.bf16.msra.mxu0 %v451
          %463 = vmatpush.bf16.msra.mxu0 %v450
          %464 = vmatpush.bf16.msra.mxu0 %v449
          %465 = vmatpush.bf16.msra.mxu0 %v448
          %466 = vmatpush.bf16.msra.mxu0 %v447
          %467 = vmatpush.bf16.msra.mxu0 %v446
          %468 = vmatpush.bf16.msra.mxu0 %v445
          %469 = vmatmul.bf16.gmra.mxu0 %v411
          %v470 = vpop.f32.mrf.mxu0
          %v471 = vadd.f32 %v405, %v470
          %v472 = vpop.f32.mrf.mxu0
          %v473 = vadd.f32 %v405, %v472
          %474 = vdwg.mxu0
          %v475 = vmax.f32 %v471, 0.0
          %v476 = vmax.f32 %v473, 0.0
          %v477 = vpack.c.bf16 %v476, %v475
          %v478 = vld [vmem:[#allocation11] sm:$0xf]
          %v479 = vld [vmem:[#allocation11 + $0x4] sm:$0xf]
          %v480 = vld [vmem:[#allocation11 + $0x8] sm:$0xf]
          %v481 = vld [vmem:[#allocation11 + $0xc] sm:$0xf]
          %v482 = vld [vmem:[#allocation11 + $0x10] sm:$0xf]
          %v483 = vld [vmem:[#allocation11 + $0x14] sm:$0xf]
          %v484 = vld [vmem:[#allocation11 + $0x18] sm:$0xf]
          %v485 = vld [vmem:[#allocation11 + $0x1c] sm:$0xf]
          %v486 = vld [vmem:[#allocation11 + $0x20] sm:$0xf]
          %v487 = vld [vmem:[#allocation11 + $0x24] sm:$0xf]
          %v488 = vld [vmem:[#allocation11 + $0x28] sm:$0xf]
          %v489 = vld [vmem:[#allocation11 + $0x2c] sm:$0xf]
          %v490 = vld [vmem:[#allocation11 + $0x30] sm:$0xf]
          %v491 = vld [vmem:[#allocation11 + $0x34] sm:$0xf]
          %v492 = vld [vmem:[#allocation11 + $0x38] sm:$0xf]
          %v493 = vld [vmem:[#allocation11 + $0x3c] sm:$0xf]
          %v494 = vld [vmem:[%s4] sm:$0x1]
          %v496 = vperm.slane %v494, 0
          %v514 = vunpack.c.l.b16 %v478
          %v515 = vunpack.c.l.b16 %v479
          %v516 = vunpack.c.l.b16 %v480
          %v517 = vunpack.c.l.b16 %v481
          %v518 = vunpack.c.l.b16 %v482
          %v519 = vunpack.c.l.b16 %v483
          %v520 = vunpack.c.l.b16 %v484
          %v521 = vunpack.c.l.b16 %v485
          %v522 = vunpack.c.l.b16 %v486
          %v523 = vunpack.c.l.b16 %v487
          %v524 = vunpack.c.l.b16 %v488
          %v525 = vunpack.c.l.b16 %v489
          %v526 = vunpack.c.l.b16 %v490
          %v527 = vunpack.c.l.b16 %v491
          %v528 = vunpack.c.l.b16 %v492
          %v529 = vunpack.c.l.b16 %v493
          %v530 = vpack.c.b16 %v515, %v514
          %v531 = vpack.c.b16 %v517, %v516
          %v532 = vpack.c.b16 %v519, %v518
          %v533 = vpack.c.b16 %v521, %v520
          %v534 = vpack.c.b16 %v523, %v522
          %v535 = vpack.c.b16 %v525, %v524
          %v536 = vpack.c.b16 %v527, %v526
          %v537 = vpack.c.b16 %v529, %v528
          %546 = vmatpush.bf16.msra.mxu0 %v537
          %547 = vmatpush.bf16.msra.mxu0 %v536
          %548 = vmatpush.bf16.msra.mxu0 %v535
          %549 = vmatpush.bf16.msra.mxu0 %v534
          %550 = vmatpush.bf16.msra.mxu0 %v533
          %551 = vmatpush.bf16.msra.mxu0 %v532
          %552 = vmatpush.bf16.msra.mxu0 %v531
          %553 = vmatpush.bf16.msra.mxu0 %v530
          %554 = vmatmul.bf16.gmra.mxu0 %v477
          %v555 = vpop.f32.mrf.mxu0
          %v556 = vadd.f32 %v496, %v555
          %v557 = vpop.f32.mrf.mxu0
          %v558 = vadd.f32 %v496, %v557
          %559 = vdwg.mxu0
          %v560 = vmax.f32 %v556, 0.0
          %v561 = vmax.f32 %v558, 0.0
          %v562 = vpack.c.bf16 %v560, %v560
          %v563 = vpack.c.bf16 %v561, %v561
          %564 = vst [vmem:[#allocation2] sm:$0xf] %v562
          %565 = vst [vmem:[#allocation2 + $0x4] sm:$0xf] %v563
          %vm566 = vcmask 7168
          %567 = vst.msk [vmem:[#allocation3] sm:$0xff] %vm566, -inf
          %568 = vst.msk [vmem:[#allocation3 + $0x8] sm:$0xff] %vm566, -inf
          %569 = vst.msk [vmem:[#allocation4] sm:$0xff] %vm566, 0.0
          %570 = vst.msk [vmem:[#allocation4 + $0x8] sm:$0xff] %vm566, 0.0
        $region68: #{tpu_custom_call.1} parent=47 // pred_fallthru
          _
        %v571 = vld [vmem:[#allocation2] sm:$0xf]
        %v572 = vld [vmem:[#allocation2 + $0x4] sm:$0xf]
        %v573 = vld [vmem:[#allocation12] sm:$0xf]
        %v574 = vld [vmem:[#allocation12 + $0x4] sm:$0xf]
        %v575 = vld [vmem:[#allocation12 + $0x8] sm:$0xf]
        %v576 = vld [vmem:[#allocation12 + $0xc] sm:$0xf]
        %v577 = vld [vmem:[#allocation12 + $0x10] sm:$0xf]
        %v578 = vld [vmem:[#allocation12 + $0x14] sm:$0xf]
        %v579 = vld [vmem:[#allocation12 + $0x18] sm:$0xf]
        %v580 = vld [vmem:[#allocation12 + $0x1c] sm:$0xf]
        %v581 = vld [vmem:[#allocation12 + $0x20] sm:$0xf]
        %v582 = vld [vmem:[#allocation12 + $0x24] sm:$0xf]
        %v583 = vld [vmem:[#allocation12 + $0x28] sm:$0xf]
        %v584 = vld [vmem:[#allocation12 + $0x2c] sm:$0xf]
        %v585 = vld [vmem:[#allocation12 + $0x30] sm:$0xf]
        %v586 = vld [vmem:[#allocation12 + $0x34] sm:$0xf]
        %v587 = vld [vmem:[#allocation12 + $0x38] sm:$0xf]
        %v588 = vld [vmem:[#allocation12 + $0x3c] sm:$0xf]
        %v589 = vld [vmem:[%s376] sm:$0x1]
        %v591 = vperm.slane %v589, 0
        %v595 = vunpack.c.l.b16 %v571
        %v596 = vunpack.c.l.b16 %v572
        %v597 = vpack.c.b16 %v596, %v595
        %v615 = vunpack.c.l.b16 %v573
        %v616 = vunpack.c.l.b16 %v574
        %v617 = vunpack.c.l.b16 %v575
        %v618 = vunpack.c.l.b16 %v576
        %v619 = vunpack.c.l.b16 %v577
        %v620 = vunpack.c.l.b16 %v578
        %v621 = vunpack.c.l.b16 %v579
        %v622 = vunpack.c.l.b16 %v580
        %v623 = vunpack.c.l.b16 %v581
        %v624 = vunpack.c.l.b16 %v582
        %v625 = vunpack.c.l.b16 %v583
        %v626 = vunpack.c.l.b16 %v584
        %v627 = vunpack.c.l.b16 %v585
        %v628 = vunpack.c.l.b16 %v586
        %v629 = vunpack.c.l.b16 %v587
        %v630 = vunpack.c.l.b16 %v588
        %v631 = vpack.c.b16 %v616, %v615
        %v632 = vpack.c.b16 %v618, %v617
        %v633 = vpack.c.b16 %v620, %v619
        %v634 = vpack.c.b16 %v622, %v621
        %v635 = vpack.c.b16 %v624, %v623
        %v636 = vpack.c.b16 %v626, %v625
        %v637 = vpack.c.b16 %v628, %v627
        %v638 = vpack.c.b16 %v630, %v629
        %647 = vmatpush.bf16.msra.mxu0 %v638
        %648 = vmatpush.bf16.msra.mxu0 %v637
        %649 = vmatpush.bf16.msra.mxu0 %v636
        %650 = vmatpush.bf16.msra.mxu0 %v635
        %651 = vmatpush.bf16.msra.mxu0 %v634
        %652 = vmatpush.bf16.msra.mxu0 %v633
        %653 = vmatpush.bf16.msra.mxu0 %v632
        %654 = vmatpush.bf16.msra.mxu0 %v631
        %655 = vmatmul.bf16.gmra.mxu0 %v597
        %v656 = vpop.f32.mrf.mxu0
        %v657 = vadd.f32 %v591, %v656
        %v658 = vpop.f32.mrf.mxu0
        %v659 = vadd.f32 %v591, %v658
        %660 = vdwg.mxu0
        // Predicated region
        $region69: #{tpu_custom_call.1} parent=47 // pred_check
          %p661 = pneg %p379
        $region70: #{tpu_custom_call.1} parent=47 // pred_check_branch
          %663 = sbr.rel (%p661) target = $region72
        $region71: #{tpu_custom_call.1} parent=47 // pred_region
          %v664 = vld [vmem:[#allocation3] sm:$0xff]
          %v665 = vld [vmem:[#allocation3 + $0x8] sm:$0xff]
          %666 = vmax.xlane.f32.xlu0 %v657
          %v667 = vpop.xlane.xlu0 %666
          %668 = vmax.xlane.f32.xlu0 %v659
          %v669 = vpop.xlane.xlu0 %668
          %v670 = vmax.f32 %v664, %v667
          %v671 = vmax.f32 %v665, %v669
          %v672 = vld [vmem:[#allocation4] sm:$0xff]
          %v673 = vld [vmem:[#allocation4 + $0x8] sm:$0xff]
          %v674 = vsub.f32 %v664, %v670
          %v675 = vsub.f32 %v665, %v671
          %v676 = vmul.f32 %v674, 1.442695
          %v677 = vpow.pop %v676
          %v678 = vmul.f32 %v675, 1.442695
          %v679 = vpow.pop %v678
          %v680 = vmul.f32 %v672, %v677
          %v681 = vmul.f32 %v673, %v679
          %683 = vset.pattern.permute.xlu0 0
          %684 = vperm.xlu0 %683, %v670
          %v685 = vpop.permute.xlu0 %684
          %688 = vset.pattern.permute.xlu0 0
          %689 = vperm.xlu0 %688, %v671
          %v690 = vpop.permute.xlu0 %689
          %v692 = vsub.f32 %v657, %v685
          %v693 = vsub.f32 %v659, %v690
          %v694 = vmul.f32 %v692, 1.442695
          %v695 = vpow.pop %v694
          %v696 = vmul.f32 %v693, 1.442695
          %v697 = vpow.pop %v696
          %698 = vadd.xlane.f32.xlu0 %v695
          %v699 = vpop.xlane.xlu0 %698
          %700 = vadd.xlane.f32.xlu0 %v697
          %v701 = vpop.xlane.xlu0 %700
          %v702 = vadd.f32 %v680, %v699
          %v703 = vadd.f32 %v681, %v701
          %vm704 = vcmask 7168
          %705 = vst.msk [vmem:[#allocation4] sm:$0xff] %vm704, %v702
          %706 = vst.msk [vmem:[#allocation4 + $0x8] sm:$0xff] %vm704, %v703
          %707 = vst.msk [vmem:[#allocation3] sm:$0xff] %vm704, %v670
          %708 = vst.msk [vmem:[#allocation3 + $0x8] sm:$0xff] %vm704, %v671
        $region72: #{tpu_custom_call.1} parent=47 // pred_fallthru
          _
        %p709 = scmp.eq.s32.totalorder %s30, 1
        %p710 = pnand %p709, %p380
        %p711 = pneg %p710
        // Predicated region
        $region73: #{tpu_custom_call.1} parent=47 // pred_check
          _
        $region74: #{tpu_custom_call.1} parent=47 // pred_check_branch
          %713 = sbr.rel (%p710) target = $region76
        $region75: #{tpu_custom_call.1} parent=47 // pred_region
          %v714 = vld [vmem:[#allocation3] sm:$0xff]
          %v715 = vld [vmem:[#allocation3 + $0x8] sm:$0xff]
          %v716 = vld [vmem:[#allocation4] sm:$0xff]
          %v717 = vld [vmem:[#allocation4 + $0x8] sm:$0xff]
          %v718 = vlog2.pop %v716
          %v719 = vmul.f32 %v718, 0.6931472
          %v720 = vlog2.pop %v717
          %v721 = vmul.f32 %v720, 0.6931472
          %v722 = vadd.f32 %v714, %v719
          %v723 = vadd.f32 %v715, %v721
          %vm724 = vcmask 7168
          %725 = vst.msk [vmem:[#allocation5] sm:$0xff] %vm724, %v722
          %726 = vst.msk [vmem:[#allocation5 + $0x8] sm:$0xff] %vm724, %v723
        $region76: #{tpu_custom_call.1} parent=47 // pred_fallthru
          _
        // Predicated region
        $region77: #{tpu_custom_call.1} parent=47 // pred_check
          %p727 = pneg %p709
        $region78: #{tpu_custom_call.1} parent=47 // pred_check_branch
          %729 = sbr.rel (%p727) target = $region80
        $region79: #{tpu_custom_call.1} parent=47 // pred_region
          %v730 = vld [vmem:[#allocation5] sm:$0xff]
          %v731 = vld [vmem:[#allocation5 + $0x8] sm:$0xff]
          %733 = vset.pattern.permute.xlu0 0
          %734 = vperm.xlu0 %733, %v730
          %v735 = vpop.permute.xlu0 %734
          %738 = vset.pattern.permute.xlu0 0
          %739 = vperm.xlu0 %738, %v731
          %v740 = vpop.permute.xlu0 %739
          %v742 = vsub.f32 %v657, %v735
          %v743 = vsub.f32 %v659, %v740
          %744 = vst [vmem:[%s372] sm:$0xff] %v742
          %745 = vst [vmem:[%s372 + $0x8] sm:$0xff] %v743
        $region80: #{tpu_custom_call.1} parent=47 // pred_fallthru
          _
        %s746 = sand.u32 %s217, 1
        %s747 = scalar_lea.sflag [#allocation8], %s746
        %s748 = sand.u32 %s217, 1
        %s749 = smul.addr %s748, 16
        %s750 = scalar_lea.vmem [#allocation14], %s749
        // Predicated region
        $region81: #{tpu_custom_call.1} parent=47 // pred_check
          %p751 = pneg %p227
        $region82: #{tpu_custom_call.1} parent=47 // pred_check_branch
          %753 = sbr.rel (%p751) target = $region84
        $region83: #{tpu_custom_call.1} parent=47 // pred_region
          %s754 = smul.u32 %s31, %s30
          %s755 = smul.u32 2, %s29
          %757 = vsyncadd %s747, 0
          %s758 = sadd.s32 %s754, %s755
          %s759 = smul.addr %s758, 8
          %s760 = scalar_lea.hbm %s7, %s759
          %s761 = sshll.u32 %s750, 4
          %s762 = int_to_ptr.vmem [resolvable:$true] %s761
          %s763 = sshll.u32 %s760, 4
          %s764 = int_to_ptr.hbm [resolvable:$true] %s763
          %769 = dma.vmem_to_hbm [thread:$0]  %s762, 256, %s764, %s747, 128, 128, 8
        $region84: #{tpu_custom_call.1} parent=47 // pred_fallthru
          _
      $region48: #{tpu_custom_call.1} parent=5 // pred_fallthru
        _
      %p770 = scmp.le.s32.totalorder 2, %s19
      // Predicated region
      $region85: #{tpu_custom_call.1} parent=5 // pred_check
        %p771 = pneg %p770
      $region86: #{tpu_custom_call.1} parent=5 // pred_check_branch
        %773 = sbr.rel (%p771) target = $region88
      $region87: #{tpu_custom_call.1} parent=5 // pred_region
        %s774 = ssub.s32 %s19, 2
        // Predicated region
        $region89: #{tpu_custom_call.1} parent=87 // pred_check
          %p775 = pneg %p233
        $region90: #{tpu_custom_call.1} parent=87 // pred_check_branch
          %777 = sbr.rel (%p775) target = $region92
        $region91: #{tpu_custom_call.1} parent=87 // pred_region
          %s778 = sand.u32 %s218, 1
          %s779 = scalar_lea.sflag [#allocation8], %s778
          %s780 = sand.u32 %s218, 1
          %s781 = smul.addr %s780, 16
          %s782 = scalar_lea.vmem [#allocation14], %s781
          %784 = dma.done %s779, 256
        $region92: #{tpu_custom_call.1} parent=87 // pred_fallthru
          _
      $region88: #{tpu_custom_call.1} parent=5 // pred_fallthru
        _
    $region6: #{tpu_custom_call.1} parent=1 // loop_footer
      %s23 = sadd.s32 1, %s19
    $region7: #{tpu_custom_call.1} parent=1 // loop_footer_branch
      %18 = sbr.rel target = $region3
    $region8: #{tpu_custom_call.1} parent=1 // loop_exit
      _
    %785 = vsyncpa [#allocation7], 1
    %s786 = scalar_lea.sflag [#allocation7], 1
    %787 = vsyncpa %s786, 1
    %788 = vsyncpa [#allocation10], 1
    %789 = vsyncpa [#allocation13], 1
    %790 = vsyncpa [#allocation8], 1
    %s791 = scalar_lea.sflag [#allocation8], 1
    %792 = vsyncpa %s791, 1

// kernel: tpu_custom_call.1
$region0: #{tpu_custom_call.1}
  #allocation0 [shape = 'u32[]', space=smem, size = 0x4, offset = 0x4, fixed_abs, tag = 'smem constant byte address 0x4 - core index']
  #allocation1 [shape = 'u32[72,128]{1,0:T(1,128)}', space=vmem, size = 0x9000, scoped, tag = 'internal scratch']
  #allocation2 [shape = 'bf16[16,128]{1,0:T(8,128)(2,1)}', space=vmem, size = 0x1000, scoped, tag = 'scratch operand']
  #allocation3 [shape = 'f32[16,1]{1,0:T(8,128)}', space=vmem, size = 0x2000, scoped, tag = 'scratch operand']
  #allocation4 [shape = 'f32[16,1]{1,0:T(8,128)}', space=vmem, size = 0x2000, scoped, tag = 'scratch operand']
  #allocation5 [shape = 'f32[16,1]{1,0:T(8,128)}', space=vmem, size = 0x2000, scoped, tag = 'scratch operand']
  %s0 = inlined_call_operand.hbm [shape: bf16[16,128], index: 0, kind: input, shape index: {}]
  %s1 = inlined_call_operand.hbm [shape: bf16[128,128], index: 1, kind: input, shape index: {}]
  %s2 = inlined_call_operand.vmem [shape: f32[1,128], index: 2, kind: input, shape index: {}]
  %s3 = inlined_call_operand.hbm [shape: bf16[128,128], index: 3, kind: input, shape index: {}]
  %s4 = inlined_call_operand.vmem [shape: f32[1,128], index: 4, kind: input, shape index: {}]
  %s5 = inlined_call_operand.hbm [shape: bf16[128,128], index: 5, kind: input, shape index: {}]
  %s6 = inlined_call_operand.vmem [shape: f32[1,128], index: 6, kind: input, shape index: {}]
  %s7 = inlined_call_operand.hbm [shape: f32[16,128], index: 7, kind: output, shape index: {}]
  %s8 = sld [smem:[#allocation0]]
  $region93: #{tpu_custom_call.1} parent=0
    _
  %s10 = ssub.s32 1, %s8
  %s11 = scalar_select 0, %s10, %s8
  $region1: #{tpu_custom_call.1} parent=0
    #allocation6 [shape = 'u8[4096]{0}', space=vmem, size = 0x1000, scoped, tag = 'input window, operand 0, single buffered']
    #allocation7 [shape = 's32[2]{0}', space=sflag, size = 0x8, scoped, tag = 'scoped memory for tpu_custom_call.1']
    #allocation8 [shape = 's32[2]{0}', space=sflag, size = 0x8, scoped, tag = 'scoped memory for tpu_custom_call.1']
    #allocation9 [shape = 'u8[32768]{0}', space=vmem, size = 0x8000, scoped, tag = 'input window, operand 1, single buffered']
    #allocation10 [shape = 's32[1]{0}', space=sflag, size = 0x4, scoped, tag = 'scoped memory for tpu_custom_call.1']
    #allocation11 [shape = 'u8[32768]{0}', space=vmem, size = 0x8000, scoped, tag = 'input window, operand 3, single buffered']
    #allocation12 [shape = 'u8[32768]{0}', space=vmem, size = 0x8000, scoped, tag = 'input window, operand 5, single buffered']
    #allocation13 [shape = 's32[1]{0}', space=sflag, size = 0x4, scoped, tag = 'scoped memory for tpu_custom_call.1']
    #allocation14 [shape = 'u8[16384]{0}', space=vmem, size = 0x4000, scoped, tag = 'output window, operand 0']
    %12 = vsyncpa [#allocation7], 0
    %13 = vsyncpa [#allocation10], 0
    %14 = vsyncpa [#allocation13], 0
    %15 = vsyncpa [#allocation8], 0
    %s16 = scalar_lea.sflag [#allocation8], 1
    %17 = vsyncpa %s16, 0
    loop: start=0, step=1, limit=4
    $region2: #{tpu_custom_call.1} parent=1 // loop_pre_header
      _
    $region3: #{tpu_custom_call.1} parent=1 // loop_header
      %s19 = sphi 0, %s23
      %p20 = scmp.ge.s32.totalorder %s19, 4
      %s26 = sphi 0, %s45
      %s27 = sphi 0, %s41
      %s28 = sphi 0, %s37
      %s29 = sphi 0, %s26
      %s30 = sphi 0, %s27
      %s31 = sphi 0, %s28
      %s32 = sphi 0, %s29
      %s33 = sphi 0, %s30
      %s34 = sphi 0, %s31
      %s48 = sphi 0, %s50
      %s51 = sphi 0, %s48
      %s52 = sphi 0, %s51
      %s68 = sphi 0, %s52
      %s72 = sphi 0, %s72
      %s74 = sphi 0, %s72
      %s75 = sphi 0, %s74
      %s89 = sphi 0, %s75
      %s93 = sphi 0, %s93
      %s95 = sphi 0, %s93
      %s96 = sphi 0, %s95
      %s110 = sphi 0, %s96
      %s114 = sphi 0, %s114
      %s116 = sphi 0, %s114
      %s117 = sphi 0, %s116
      %s131 = sphi 0, %s117
      %s135 = sphi 0, %s135
      %s137 = sphi 0, %s135
      %s138 = sphi 0, %s137
      %s152 = sphi 0, %s138
      %s158 = sphi 0, %s160
      %s161 = sphi 0, %s158
      %s162 = sphi 0, %s161
      %s178 = sphi 0, %s162
      %s184 = sphi 0, %s186
      %s187 = sphi 0, %s184
      %s188 = sphi 0, %s187
      %s204 = sphi 0, %s188
      %s214 = sphi 0, %s216
      %s217 = sphi 0, %s214
      %s218 = sphi 0, %s217
      %s234 = sphi 0, %s218
    $region4: #{tpu_custom_call.1} parent=1 // loop_header_branch
      %22 = sbr.rel (%p20) target = $region8
    $region5: #{tpu_custom_call.1} parent=1 // loop_body
      %s24 = ssub.s32 %s19, 1
      %s25 = ssub.s32 %s19, 2
      %s35 = sadd.s32 1, %s28
      %p36 = scmp.ge.s32.totalorder %s35, 1
      %s37 = scalar_select %p36, 0, %s35
      %s38 = sadd.s32 1, %s27
      %s39 = scalar_select %p36, %s38, %s27
      %p40 = scmp.ge.s32.totalorder %s39, 2
      %s41 = scalar_select %p40, 0, %s39
      %s42 = sadd.s32 1, %s26
      %s43 = scalar_select %p40, %s42, %s26
      %p44 = scmp.ge.s32.totalorder %s43, 1
      %s45 = scalar_select %p44, 0, %s43
      %s46 = ssub.s32 %s26, %s45
      %p47 = scmp.eq.s32.totalorder %s46, 0
      %s49 = sadd.s32 %s48, 1
      %s50 = scalar_select %p47, %s48, %s49
      %p53 = pneg %p47
      %p54 = scmp.eq.s32.totalorder %s19, 1
      %p55 = por %p53, %p54
      %p56 = scmp.ne.s32.totalorder %s48, %s51
      %p57 = scmp.eq.s32.totalorder %s19, 0
      %p58 = por %p56, %p57
      %p59 = scmp.ne.s32.totalorder %s48, %s51
      %p60 = scmp.eq.s32.totalorder %s24, 1
      %p61 = por %p59, %p60
      %p62 = scmp.ne.s32.totalorder %s51, %s52
      %p63 = scmp.eq.s32.totalorder %s24, 0
      %p64 = por %p62, %p63
      %p65 = scmp.ne.s32.totalorder %s51, %s52
      %p66 = scmp.eq.s32.totalorder %s25, 1
      %p67 = por %p65, %p66
      %p69 = scmp.ne.s32.totalorder %s52, %s68
      %p70 = scmp.eq.s32.totalorder %s25, 0
      %p71 = por %p69, %p70
      %s73 = sadd.s32 %s72, 1
      %p76 = scmp.eq.s32.totalorder %s19, 1
      %p77 = scmp.ne.s32.totalorder %s72, %s74
      %p78 = scmp.eq.s32.totalorder %s19, 0
      %p79 = por %p77, %p78
      %p80 = scmp.ne.s32.totalorder %s72, %s74
      %p81 = scmp.eq.s32.totalorder %s24, 1
      %p82 = por %p80, %p81
      %p83 = scmp.ne.s32.totalorder %s74, %s75
      %p84 = scmp.eq.s32.totalorder %s24, 0
      %p85 = por %p83, %p84
      %p86 = scmp.ne.s32.totalorder %s74, %s75
      %p87 = scmp.eq.s32.totalorder %s25, 1
      %p88 = por %p86, %p87
      %p90 = scmp.ne.s32.totalorder %s75, %s89
      %p91 = scmp.eq.s32.totalorder %s25, 0
      %p92 = por %p90, %p91
      %s94 = sadd.s32 %s93, 1
      %p97 = scmp.eq.s32.totalorder %s19, 1
      %p98 = scmp.ne.s32.totalorder %s93, %s95
      %p99 = scmp.eq.s32.totalorder %s19, 0
      %p100 = por %p98, %p99
      %p101 = scmp.ne.s32.totalorder %s93, %s95
      %p102 = scmp.eq.s32.totalorder %s24, 1
      %p103 = por %p101, %p102
      %p104 = scmp.ne.s32.totalorder %s95, %s96
      %p105 = scmp.eq.s32.totalorder %s24, 0
      %p106 = por %p104, %p105
      %p107 = scmp.ne.s32.totalorder %s95, %s96
      %p108 = scmp.eq.s32.totalorder %s25, 1
      %p109 = por %p107, %p108
      %p111 = scmp.ne.s32.totalorder %s96, %s110
      %p112 = scmp.eq.s32.totalorder %s25, 0
      %p113 = por %p111, %p112
      %s115 = sadd.s32 %s114, 1
      %p118 = scmp.eq.s32.totalorder %s19, 1
      %p119 = scmp.ne.s32.totalorder %s114, %s116
      %p120 = scmp.eq.s32.totalorder %s19, 0
      %p121 = por %p119, %p120
      %p122 = scmp.ne.s32.totalorder %s114, %s116
      %p123 = scmp.eq.s32.totalorder %s24, 1
      %p124 = por %p122, %p123
      %p125 = scmp.ne.s32.totalorder %s116, %s117
      %p126 = scmp.eq.s32.totalorder %s24, 0
      %p127 = por %p125, %p126
      %p128 = scmp.ne.s32.totalorder %s116, %s117
      %p129 = scmp.eq.s32.totalorder %s25, 1
      %p130 = por %p128, %p129
      %p132 = scmp.ne.s32.totalorder %s117, %s131
      %p133 = scmp.eq.s32.totalorder %s25, 0
      %p134 = por %p132, %p133
      %s136 = sadd.s32 %s135, 1
      %p139 = scmp.eq.s32.totalorder %s19, 1
      %p140 = scmp.ne.s32.totalorder %s135, %s137
      %p141 = scmp.eq.s32.totalorder %s19, 0
      %p142 = por %p140, %p141
      %p143 = scmp.ne.s32.totalorder %s135, %s137
      %p144 = scmp.eq.s32.totalorder %s24, 1
      %p145 = por %p143, %p144
      %p146 = scmp.ne.s32.totalorder %s137, %s138
      %p147 = scmp.eq.s32.totalorder %s24, 0
      %p148 = por %p146, %p147
      %p149 = scmp.ne.s32.totalorder %s137, %s138
      %p150 = scmp.eq.s32.totalorder %s25, 1
      %p151 = por %p149, %p150
      %p153 = scmp.ne.s32.totalorder %s138, %s152
      %p154 = scmp.eq.s32.totalorder %s25, 0
      %p155 = por %p153, %p154
      %s156 = ssub.s32 %s28, %s37
      %p157 = scmp.eq.s32.totalorder %s156, 0
      %s159 = sadd.s32 %s158, 1
      %s160 = scalar_select %p157, %s158, %s159
      %p163 = pneg %p157
      %p164 = scmp.eq.s32.totalorder %s19, 1
      %p165 = por %p163, %p164
      %p166 = scmp.ne.s32.totalorder %s158, %s161
      %p167 = scmp.eq.s32.totalorder %s19, 0
      %p168 = por %p166, %p167
      %p169 = scmp.ne.s32.totalorder %s158, %s161
      %p170 = scmp.eq.s32.totalorder %s24, 1
      %p171 = por %p169, %p170
      %p172 = scmp.ne.s32.totalorder %s161, %s162
      %p173 = scmp.eq.s32.totalorder %s24, 0
      %p174 = por %p172, %p173
      %p175 = scmp.ne.s32.totalorder %s161, %s162
      %p176 = scmp.eq.s32.totalorder %s25, 1
      %p177 = por %p175, %p176
      %p179 = scmp.ne.s32.totalorder %s162, %s178
      %p180 = scmp.eq.s32.totalorder %s25, 0
      %p181 = por %p179, %p180
      %s182 = ssub.s32 %s28, %s37
      %p183 = scmp.eq.s32.totalorder %s182, 0
      %s185 = sadd.s32 %s184, 1
      %s186 = scalar_select %p183, %s184, %s185
      %p189 = pneg %p183
      %p190 = scmp.eq.s32.totalorder %s19, 1
      %p191 = por %p189, %p190
      %p192 = scmp.ne.s32.totalorder %s184, %s187
      %p193 = scmp.eq.s32.totalorder %s19, 0
      %p194 = por %p192, %p193
      %p195 = scmp.ne.s32.totalorder %s184, %s187
      %p196 = scmp.eq.s32.totalorder %s24, 1
      %p197 = por %p195, %p196
      %p198 = scmp.ne.s32.totalorder %s187, %s188
      %p199 = scmp.eq.s32.totalorder %s24, 0
      %p200 = por %p198, %p199
      %p201 = scmp.ne.s32.totalorder %s187, %s188
      %p202 = scmp.eq.s32.totalorder %s25, 1
      %p203 = por %p201, %p202
      %p205 = scmp.ne.s32.totalorder %s188, %s204
      %p206 = scmp.eq.s32.totalorder %s25, 0
      %p207 = por %p205, %p206
      %s208 = smul.u32 %s28, %s27
      %s209 = smul.u32 %s37, %s41
      %s210 = ssub.s32 %s26, %s45
      %s211 = ssub.s32 %s208, %s209
      %s212 = sor.u32 %s210, %s211
      %p213 = scmp.eq.s32.totalorder %s212, 0
      %s215 = sadd.s32 %s214, 1
      %s216 = scalar_select %p213, %s214, %s215
      %p219 = pneg %p213
      %p220 = scmp.eq.s32.totalorder %s19, 1
      %p221 = por %p219, %p220
      %p222 = scmp.ne.s32.totalorder %s214, %s217
      %p223 = scmp.eq.s32.totalorder %s19, 0
      %p224 = por %p222, %p223
      %p225 = scmp.ne.s32.totalorder %s214, %s217
      %p226 = scmp.eq.s32.totalorder %s24, 1
      %p227 = por %p225, %p226
      %p228 = scmp.ne.s32.totalorder %s217, %s218
      %p229 = scmp.eq.s32.totalorder %s24, 0
      %p230 = por %p228, %p229
      %p231 = scmp.ne.s32.totalorder %s217, %s218
      %p232 = scmp.eq.s32.totalorder %s25, 1
      %p233 = por %p231, %p232
      %p235 = scmp.ne.s32.totalorder %s218, %s234
      %p236 = scmp.eq.s32.totalorder %s25, 0
      %p237 = por %p235, %p236
      %p238 = scmp.le.s32.totalorder 1, %s19
      %p239 = scmp.lt.s32.totalorder %s19, 3
      %p240 = pnand %p238, %p239
      %p241 = pneg %p240
      // Predicated region
      $region9: #{tpu_custom_call.1} parent=5 // pred_check
        _
      $region10: #{tpu_custom_call.1} parent=5 // pred_check_branch
        %243 = sbr.rel (%p240) target = $region12
      $region11: #{tpu_custom_call.1} parent=5 // pred_region
        %s244 = ssub.s32 %s19, 1
        // Predicated region
        $region13: #{tpu_custom_call.1} parent=11 // pred_check
          %p245 = pneg %p64
        $region14: #{tpu_custom_call.1} parent=11 // pred_check_branch
          %247 = sbr.rel (%p245) target = $region16
        $region15: #{tpu_custom_call.1} parent=11 // pred_region
          %s248 = smul.u32 2, %s29
          %250 = vsyncadd [#allocation7], 0
          %s251 = smul.addr %s248, 4
          %s252 = scalar_lea.hbm %s0, %s251
          %s253 = sshll.u32 %s252, 4
          %s254 = int_to_ptr.hbm [resolvable:$true] %s253
          %s255 = sshll.u32 [#allocation6], 4
          %s256 = int_to_ptr.vmem [resolvable:$true] %s255
          %261 = dma.hbm_to_vmem [thread:$0]  %s254, 128, %s256, [#allocation7], 64, 64, 4
        $region16: #{tpu_custom_call.1} parent=11 // pred_fallthru
          _
        // Predicated region
        $region17: #{tpu_custom_call.1} parent=11 // pred_check
          %p262 = pneg %p85
        $region18: #{tpu_custom_call.1} parent=11 // pred_check_branch
          %264 = sbr.rel (%p262) target = $region20
        $region19: #{tpu_custom_call.1} parent=11 // pred_region
          %266 = vsyncadd [#allocation10], 0
          %s267 = sshll.u32 %s1, 4
          %s268 = int_to_ptr.hbm [resolvable:$true] %s267
          %s269 = sshll.u32 [#allocation9], 4
          %s270 = int_to_ptr.vmem [resolvable:$true] %s269
          %275 = dma.hbm_to_vmem [thread:$0]  %s268, 1024, %s270, [#allocation10], 64, 64, 4
        $region20: #{tpu_custom_call.1} parent=11 // pred_fallthru
          _
        // Predicated region
        $region21: #{tpu_custom_call.1} parent=11 // pred_check
          %p276 = pneg %p106
        $region22: #{tpu_custom_call.1} parent=11 // pred_check_branch
          %278 = sbr.rel (%p276) target = $region24
        $region23: #{tpu_custom_call.1} parent=11 // pred_region
          _
        $region24: #{tpu_custom_call.1} parent=11 // pred_fallthru
          _
        // Predicated region
        $region25: #{tpu_custom_call.1} parent=11 // pred_check
          %p279 = pneg %p127
        $region26: #{tpu_custom_call.1} parent=11 // pred_check_branch
          %281 = sbr.rel (%p279) target = $region28
        $region27: #{tpu_custom_call.1} parent=11 // pred_region
          %283 = vsyncadd [#allocation10], 0
          %s284 = sshll.u32 %s3, 4
          %s285 = int_to_ptr.hbm [resolvable:$true] %s284
          %s286 = sshll.u32 [#allocation11], 4
          %s287 = int_to_ptr.vmem [resolvable:$true] %s286
          %292 = dma.hbm_to_vmem [thread:$0]  %s285, 1024, %s287, [#allocation10], 64, 64, 4
        $region28: #{tpu_custom_call.1} parent=11 // pred_fallthru
          _
        // Predicated region
        $region29: #{tpu_custom_call.1} parent=11 // pred_check
          %p293 = pneg %p148
        $region30: #{tpu_custom_call.1} parent=11 // pred_check_branch
          %295 = sbr.rel (%p293) target = $region32
        $region31: #{tpu_custom_call.1} parent=11 // pred_region
          _
        $region32: #{tpu_custom_call.1} parent=11 // pred_fallthru
          _
        // Predicated region
        $region33: #{tpu_custom_call.1} parent=11 // pred_check
          %p296 = pneg %p174
        $region34: #{tpu_custom_call.1} parent=11 // pred_check_branch
          %298 = sbr.rel (%p296) target = $region36
        $region35: #{tpu_custom_call.1} parent=11 // pred_region
          %300 = vsyncadd [#allocation13], 0
          %s301 = smul.addr %s31, 4
          %s302 = scalar_lea.hbm %s5, %s301
          %s303 = sshll.u32 %s302, 4
          %s304 = int_to_ptr.hbm [resolvable:$true] %s303
          %s305 = sshll.u32 [#allocation12], 4
          %s306 = int_to_ptr.vmem [resolvable:$true] %s305
          %311 = dma.hbm_to_vmem [thread:$0]  %s304, 1024, %s306, [#allocation13], 64, 64, 4
        $region36: #{tpu_custom_call.1} parent=11 // pred_fallthru
          _
        // Predicated region
        $region37: #{tpu_custom_call.1} parent=11 // pred_check
          %p312 = pneg %p200
        $region38: #{tpu_custom_call.1} parent=11 // pred_check_branch
          %314 = sbr.rel (%p312) target = $region40
        $region39: #{tpu_custom_call.1} parent=11 // pred_region
          %p315 = scmp.lt.s32.totalorder %s31, 0
          %s316 = scalar_select %p315, %s31, 0
          %s317 = scalar_lea.vmem %s6, %s316
        $region40: #{tpu_custom_call.1} parent=11 // pred_fallthru
          _
      $region12: #{tpu_custom_call.1} parent=5 // pred_fallthru
        _
      %p318 = scmp.lt.s32.totalorder %s19, 2
      // Predicated region
      $region41: #{tpu_custom_call.1} parent=5 // pred_check
        %p319 = pneg %p318
      $region42: #{tpu_custom_call.1} parent=5 // pred_check_branch
        %321 = sbr.rel (%p319) target = $region44
      $region43: #{tpu_custom_call.1} parent=5 // pred_region
        _
      $region44: #{tpu_custom_call.1} parent=5 // pred_fallthru
        _
      %p322 = scmp.le.s32.totalorder 1, %s19
      %p323 = scmp.lt.s32.totalorder %s19, 3
      %p324 = pnand %p322, %p323
      %p325 = pneg %p324
      // Predicated region
      $region45: #{tpu_custom_call.1} parent=5 // pred_check
        _
      $region46: #{tpu_custom_call.1} parent=5 // pred_check_branch
        %327 = sbr.rel (%p324) target = $region48
      $region47: #{tpu_custom_call.1} parent=5 // pred_region
        %s328 = ssub.s32 %s19, 1
        // Predicated region
        $region49: #{tpu_custom_call.1} parent=47 // pred_check
          %p329 = pneg %p64
        $region50: #{tpu_custom_call.1} parent=47 // pred_check_branch
          %331 = sbr.rel (%p329) target = $region52
        $region51: #{tpu_custom_call.1} parent=47 // pred_region
          %333 = dma.done [#allocation7], 128
        $region52: #{tpu_custom_call.1} parent=47 // pred_fallthru
          _
        // Predicated region
        $region53: #{tpu_custom_call.1} parent=47 // pred_check
          %p334 = pneg %p85
        $region54: #{tpu_custom_call.1} parent=47 // pred_check_branch
          %336 = sbr.rel (%p334) target = $region56
        $region55: #{tpu_custom_call.1} parent=47 // pred_region
          %338 = dma.done [#allocation10], 1024
        $region56: #{tpu_custom_call.1} parent=47 // pred_fallthru
          _
        // Predicated region
        $region57: #{tpu_custom_call.1} parent=47 // pred_check
          %p339 = pneg %p127
        $region58: #{tpu_custom_call.1} parent=47 // pred_check_branch
          %341 = sbr.rel (%p339) target = $region60
        $region59: #{tpu_custom_call.1} parent=47 // pred_region
          %343 = dma.done [#allocation10], 1024
        $region60: #{tpu_custom_call.1} parent=47 // pred_fallthru
          _
        // Predicated region
        $region61: #{tpu_custom_call.1} parent=47 // pred_check
          %p344 = pneg %p174
        $region62: #{tpu_custom_call.1} parent=47 // pred_check_branch
          %346 = sbr.rel (%p344) target = $region64
        $region63: #{tpu_custom_call.1} parent=47 // pred_region
          %348 = dma.done [#allocation13], 1024
        $region64: #{tpu_custom_call.1} parent=47 // pred_fallthru
          _
        %p349 = pneg %p64
        %p350 = pneg %p61
        %p351 = pneg %p85
        %p352 = pneg %p82
        %p353 = pneg %p106
        %p354 = pneg %p103
        %p355 = pneg %p127
        %p356 = pneg %p124
        %p357 = pneg %p148
        %p358 = pneg %p145
        %p359 = pneg %p174
        %p360 = pneg %p171
        %p361 = scmp.lt.s32.totalorder %s31, 0
        %s362 = scalar_select %p361, %s31, 0
        %s363 = scalar_lea.vmem %s6, %s362
        %p364 = pneg %p200
        %p365 = pneg %p197
        %p366 = pneg %p230
        %p367 = pneg %p227
        %s368 = sand.u32 %s217, 1
        %s369 = scalar_lea.sflag [#allocation8], %s368
        %s370 = sand.u32 %s217, 1
        %s371 = smul.addr %s370, 16
        %s372 = scalar_lea.vmem [#allocation14], %s371
        %s373 = smul.u32 2, %s29
        %p374 = scmp.lt.s32.totalorder %s31, 0
        %s375 = scalar_select %p374, %s31, 0
        %s376 = scalar_lea.vmem %s6, %s375
        %s377 = smul.u32 %s31, %s30
        %s378 = smul.u32 2, %s29
        %p379 = scmp.eq.s32.totalorder %s30, 0
        %p380 = scmp.eq.s32.totalorder %s31, 0
        %p381 = pnand %p379, %p380
        %p382 = pneg %p381
        // Predicated region
        $region65: #{tpu_custom_call.1} parent=47 // pred_check
          _
        $region66: #{tpu_custom_call.1} parent=47 // pred_check_branch
          %384 = sbr.rel (%p381) target = $region68
        $region67: #{tpu_custom_call.1} parent=47 // pred_region
          %v385 = vld [vmem:[#allocation6] sm:$0xf]
          %v386 = vld [vmem:[#allocation6 + $0x4] sm:$0xf]
          %v387 = vld [vmem:[#allocation9] sm:$0xf]
          %v388 = vld [vmem:[#allocation9 + $0x4] sm:$0xf]
          %v389 = vld [vmem:[#allocation9 + $0x8] sm:$0xf]
          %v390 = vld [vmem:[#allocation9 + $0xc] sm:$0xf]
          %v391 = vld [vmem:[#allocation9 + $0x10] sm:$0xf]
          %v392 = vld [vmem:[#allocation9 + $0x14] sm:$0xf]
          %v393 = vld [vmem:[#allocation9 + $0x18] sm:$0xf]
          %v394 = vld [vmem:[#allocation9 + $0x1c] sm:$0xf]
          %v395 = vld [vmem:[#allocation9 + $0x20] sm:$0xf]
          %v396 = vld [vmem:[#allocation9 + $0x24] sm:$0xf]
          %v397 = vld [vmem:[#allocation9 + $0x28] sm:$0xf]
          %v398 = vld [vmem:[#allocation9 + $0x2c] sm:$0xf]
          %v399 = vld [vmem:[#allocation9 + $0x30] sm:$0xf]
          %v400 = vld [vmem:[#allocation9 + $0x34] sm:$0xf]
          %v401 = vld [vmem:[#allocation9 + $0x38] sm:$0xf]
          %v402 = vld [vmem:[#allocation9 + $0x3c] sm:$0xf]
          %v403 = vld [vmem:[%s2] sm:$0x1]
          %v405 = vperm.slane %v403, 0
          %v409 = vunpack.c.l.b16 %v385
          %v410 = vunpack.c.l.b16 %v386
          %v411 = vpack.c.b16 %v410, %v409
          %v429 = vunpack.c.l.b16 %v387
          %v430 = vunpack.c.l.b16 %v388
          %v431 = vunpack.c.l.b16 %v389
          %v432 = vunpack.c.l.b16 %v390
          %v433 = vunpack.c.l.b16 %v391
          %v434 = vunpack.c.l.b16 %v392
          %v435 = vunpack.c.l.b16 %v393
          %v436 = vunpack.c.l.b16 %v394
          %v437 = vunpack.c.l.b16 %v395
          %v438 = vunpack.c.l.b16 %v396
          %v439 = vunpack.c.l.b16 %v397
          %v440 = vunpack.c.l.b16 %v398
          %v441 = vunpack.c.l.b16 %v399
          %v442 = vunpack.c.l.b16 %v400
          %v443 = vunpack.c.l.b16 %v401
          %v444 = vunpack.c.l.b16 %v402
          %v445 = vpack.c.b16 %v430, %v429
          %v446 = vpack.c.b16 %v432, %v431
          %v447 = vpack.c.b16 %v434, %v433
          %v448 = vpack.c.b16 %v436, %v435
          %v449 = vpack.c.b16 %v438, %v437
          %v450 = vpack.c.b16 %v440, %v439
          %v451 = vpack.c.b16 %v442, %v441
          %v452 = vpack.c.b16 %v444, %v443
          %461 = vmatpush.bf16.msra.mxu0 %v452
          %462 = vmatpush.bf16.msra.mxu0 %v451
          %463 = vmatpush.bf16.msra.mxu0 %v450
          %464 = vmatpush.bf16.msra.mxu0 %v449
          %465 = vmatpush.bf16.msra.mxu0 %v448
          %466 = vmatpush.bf16.msra.mxu0 %v447
          %467 = vmatpush.bf16.msra.mxu0 %v446
          %468 = vmatpush.bf16.msra.mxu0 %v445
          %469 = vmatmul.bf16.gmra.mxu0 %v411
          %v470 = vpop.f32.mrf.mxu0
          %v471 = vadd.f32 %v405, %v470
          %v472 = vpop.f32.mrf.mxu0
          %v473 = vadd.f32 %v405, %v472
          %474 = vdwg.mxu0
          %v475 = vmax.f32 %v471, 0.0
          %v476 = vmax.f32 %v473, 0.0
          %v477 = vpack.c.bf16 %v476, %v475
          %v478 = vld [vmem:[#allocation11] sm:$0xf]
          %v479 = vld [vmem:[#allocation11 + $0x4] sm:$0xf]
          %v480 = vld [vmem:[#allocation11 + $0x8] sm:$0xf]
          %v481 = vld [vmem:[#allocation11 + $0xc] sm:$0xf]
          %v482 = vld [vmem:[#allocation11 + $0x10] sm:$0xf]
          %v483 = vld [vmem:[#allocation11 + $0x14] sm:$0xf]
          %v484 = vld [vmem:[#allocation11 + $0x18] sm:$0xf]
          %v485 = vld [vmem:[#allocation11 + $0x1c] sm:$0xf]
          %v486 = vld [vmem:[#allocation11 + $0x20] sm:$0xf]
          %v487 = vld [vmem:[#allocation11 + $0x24] sm:$0xf]
          %v488 = vld [vmem:[#allocation11 + $0x28] sm:$0xf]
          %v489 = vld [vmem:[#allocation11 + $0x2c] sm:$0xf]
          %v490 = vld [vmem:[#allocation11 + $0x30] sm:$0xf]
          %v491 = vld [vmem:[#allocation11 + $0x34] sm:$0xf]
          %v492 = vld [vmem:[#allocation11 + $0x38] sm:$0xf]
          %v493 = vld [vmem:[#allocation11 + $0x3c] sm:$0xf]
          %v494 = vld [vmem:[%s4] sm:$0x1]
          %v496 = vperm.slane %v494, 0
          %v514 = vunpack.c.l.b16 %v478
          %v515 = vunpack.c.l.b16 %v479
          %v516 = vunpack.c.l.b16 %v480
          %v517 = vunpack.c.l.b16 %v481
          %v518 = vunpack.c.l.b16 %v482
          %v519 = vunpack.c.l.b16 %v483
          %v520 = vunpack.c.l.b16 %v484
          %v521 = vunpack.c.l.b16 %v485
          %v522 = vunpack.c.l.b16 %v486
          %v523 = vunpack.c.l.b16 %v487
          %v524 = vunpack.c.l.b16 %v488
          %v525 = vunpack.c.l.b16 %v489
          %v526 = vunpack.c.l.b16 %v490
          %v527 = vunpack.c.l.b16 %v491
          %v528 = vunpack.c.l.b16 %v492
          %v529 = vunpack.c.l.b16 %v493
          %v530 = vpack.c.b16 %v515, %v514
          %v531 = vpack.c.b16 %v517, %v516
          %v532 = vpack.c.b16 %v519, %v518
          %v533 = vpack.c.b16 %v521, %v520
          %v534 = vpack.c.b16 %v523, %v522
          %v535 = vpack.c.b16 %v525, %v524
          %v536 = vpack.c.b16 %v527, %v526
          %v537 = vpack.c.b16 %v529, %v528
          %546 = vmatpush.bf16.msra.mxu0 %v537
          %547 = vmatpush.bf16.msra.mxu0 %v536
          %548 = vmatpush.bf16.msra.mxu0 %v535
          %549 = vmatpush.bf16.msra.mxu0 %v534
          %550 = vmatpush.bf16.msra.mxu0 %v533
          %551 = vmatpush.bf16.msra.mxu0 %v532
          %552 = vmatpush.bf16.msra.mxu0 %v531
          %553 = vmatpush.bf16.msra.mxu0 %v530
          %554 = vmatmul.bf16.gmra.mxu0 %v477
          %v555 = vpop.f32.mrf.mxu0
          %v556 = vadd.f32 %v496, %v555
          %v557 = vpop.f32.mrf.mxu0
          %v558 = vadd.f32 %v496, %v557
          %559 = vdwg.mxu0
          %v560 = vmax.f32 %v556, 0.0
          %v561 = vmax.f32 %v558, 0.0
          %v562 = vpack.c.bf16 %v560, %v560
          %v563 = vpack.c.bf16 %v561, %v561
          %564 = vst [vmem:[#allocation2] sm:$0xf] %v562
          %565 = vst [vmem:[#allocation2 + $0x4] sm:$0xf] %v563
          %vm566 = vcmask 7168
          %567 = vst.msk [vmem:[#allocation3] sm:$0xff] %vm566, -inf
          %568 = vst.msk [vmem:[#allocation3 + $0x8] sm:$0xff] %vm566, -inf
          %569 = vst.msk [vmem:[#allocation4] sm:$0xff] %vm566, 0.0
          %570 = vst.msk [vmem:[#allocation4 + $0x8] sm:$0xff] %vm566, 0.0
        $region68: #{tpu_custom_call.1} parent=47 // pred_fallthru
          _
        %v571 = vld [vmem:[#allocation2] sm:$0xf]
        %v572 = vld [vmem:[#allocation2 + $0x4] sm:$0xf]
        %v573 = vld [vmem:[#allocation12] sm:$0xf]
        %v574 = vld [vmem:[#allocation12 + $0x4] sm:$0xf]
        %v575 = vld [vmem:[#allocation12 + $0x8] sm:$0xf]
        %v576 = vld [vmem:[#allocation12 + $0xc] sm:$0xf]
        %v577 = vld [vmem:[#allocation12 + $0x10] sm:$0xf]
        %v578 = vld [vmem:[#allocation12 + $0x14] sm:$0xf]
        %v579 = vld [vmem:[#allocation12 + $0x18] sm:$0xf]
        %v580 = vld [vmem:[#allocation12 + $0x1c] sm:$0xf]
        %v581 = vld [vmem:[#allocation12 + $0x20] sm:$0xf]
        %v582 = vld [vmem:[#allocation12 + $0x24] sm:$0xf]
        %v583 = vld [vmem:[#allocation12 + $0x28] sm:$0xf]
        %v584 = vld [vmem:[#allocation12 + $0x2c] sm:$0xf]
        %v585 = vld [vmem:[#allocation12 + $0x30] sm:$0xf]
        %v586 = vld [vmem:[#allocation12 + $0x34] sm:$0xf]
        %v587 = vld [vmem:[#allocation12 + $0x38] sm:$0xf]
        %v588 = vld [vmem:[#allocation12 + $0x3c] sm:$0xf]
        %v589 = vld [vmem:[%s376] sm:$0x1]
        %v591 = vperm.slane %v589, 0
        %v595 = vunpack.c.l.b16 %v571
        %v596 = vunpack.c.l.b16 %v572
        %v597 = vpack.c.b16 %v596, %v595
        %v615 = vunpack.c.l.b16 %v573
        %v616 = vunpack.c.l.b16 %v574
        %v617 = vunpack.c.l.b16 %v575
        %v618 = vunpack.c.l.b16 %v576
        %v619 = vunpack.c.l.b16 %v577
        %v620 = vunpack.c.l.b16 %v578
        %v621 = vunpack.c.l.b16 %v579
        %v622 = vunpack.c.l.b16 %v580
        %v623 = vunpack.c.l.b16 %v581
        %v624 = vunpack.c.l.b16 %v582
        %v625 = vunpack.c.l.b16 %v583
        %v626 = vunpack.c.l.b16 %v584
        %v627 = vunpack.c.l.b16 %v585
        %v628 = vunpack.c.l.b16 %v586
        %v629 = vunpack.c.l.b16 %v587
        %v630 = vunpack.c.l.b16 %v588
        %v631 = vpack.c.b16 %v616, %v615
        %v632 = vpack.c.b16 %v618, %v617
        %v633 = vpack.c.b16 %v620, %v619
        %v634 = vpack.c.b16 %v622, %v621
        %v635 = vpack.c.b16 %v624, %v623
        %v636 = vpack.c.b16 %v626, %v625
        %v637 = vpack.c.b16 %v628, %v627
        %v638 = vpack.c.b16 %v630, %v629
        %647 = vmatpush.bf16.msra.mxu0 %v638
        %648 = vmatpush.bf16.msra.mxu0 %v637
        %649 = vmatpush.bf16.msra.mxu0 %v636
        %650 = vmatpush.bf16.msra.mxu0 %v635
        %651 = vmatpush.bf16.msra.mxu0 %v634
        %652 = vmatpush.bf16.msra.mxu0 %v633
        %653 = vmatpush.bf16.msra.mxu0 %v632
        %654 = vmatpush.bf16.msra.mxu0 %v631
        %655 = vmatmul.bf16.gmra.mxu0 %v597
        %v656 = vpop.f32.mrf.mxu0
        %v657 = vadd.f32 %v591, %v656
        %v658 = vpop.f32.mrf.mxu0
        %v659 = vadd.f32 %v591, %v658
        %660 = vdwg.mxu0
        // Predicated region
        $region69: #{tpu_custom_call.1} parent=47 // pred_check
          %p661 = pneg %p379
        $region70: #{tpu_custom_call.1} parent=47 // pred_check_branch
          %663 = sbr.rel (%p661) target = $region72
        $region71: #{tpu_custom_call.1} parent=47 // pred_region
          %v664 = vld [vmem:[#allocation3] sm:$0xff]
          %v665 = vld [vmem:[#allocation3 + $0x8] sm:$0xff]
          %666 = vmax.xlane.f32.xlu0 %v657
          %v667 = vpop.xlane.xlu0 %666
          %668 = vmax.xlane.f32.xlu0 %v659
          %v669 = vpop.xlane.xlu0 %668
          %v670 = vmax.f32 %v664, %v667
          %v671 = vmax.f32 %v665, %v669
          %v672 = vld [vmem:[#allocation4] sm:$0xff]
          %v673 = vld [vmem:[#allocation4 + $0x8] sm:$0xff]
          %v674 = vsub.f32 %v664, %v670
          %v675 = vsub.f32 %v665, %v671
          %v676 = vmul.f32 %v674, 1.442695
          %v677 = vpow.pop %v676
          %v678 = vmul.f32 %v675, 1.442695
          %v679 = vpow.pop %v678
          %v680 = vmul.f32 %v672, %v677
          %v681 = vmul.f32 %v673, %v679
          %683 = vset.pattern.permute.xlu0 0
          %684 = vperm.xlu0 %683, %v670
          %v685 = vpop.permute.xlu0 %684
          %688 = vset.pattern.permute.xlu0 0
          %689 = vperm.xlu0 %688, %v671
          %v690 = vpop.permute.xlu0 %689
          %v692 = vsub.f32 %v657, %v685
          %v693 = vsub.f32 %v659, %v690
          %v694 = vmul.f32 %v692, 1.442695
          %v695 = vpow.pop %v694
          %v696 = vmul.f32 %v693, 1.442695
          %v697 = vpow.pop %v696
          %698 = vadd.xlane.f32.xlu0 %v695
          %v699 = vpop.xlane.xlu0 %698
          %700 = vadd.xlane.f32.xlu0 %v697
          %v701 = vpop.xlane.xlu0 %700
          %v702 = vadd.f32 %v680, %v699
          %v703 = vadd.f32 %v681, %v701
          %vm704 = vcmask 7168
          %705 = vst.msk [vmem:[#allocation4] sm:$0xff] %vm704, %v702
          %706 = vst.msk [vmem:[#allocation4 + $0x8] sm:$0xff] %vm704, %v703
          %707 = vst.msk [vmem:[#allocation3] sm:$0xff] %vm704, %v670
          %708 = vst.msk [vmem:[#allocation3 + $0x8] sm:$0xff] %vm704, %v671
        $region72: #{tpu_custom_call.1} parent=47 // pred_fallthru
          _
        %p709 = scmp.eq.s32.totalorder %s30, 1
        %p710 = pnand %p709, %p380
        %p711 = pneg %p710
        // Predicated region
        $region73: #{tpu_custom_call.1} parent=47 // pred_check
          _
        $region74: #{tpu_custom_call.1} parent=47 // pred_check_branch
          %713 = sbr.rel (%p710) target = $region76
        $region75: #{tpu_custom_call.1} parent=47 // pred_region
          %v714 = vld [vmem:[#allocation3] sm:$0xff]
          %v715 = vld [vmem:[#allocation3 + $0x8] sm:$0xff]
          %v716 = vld [vmem:[#allocation4] sm:$0xff]
          %v717 = vld [vmem:[#allocation4 + $0x8] sm:$0xff]
          %v718 = vlog2.pop %v716
          %v719 = vmul.f32 %v718, 0.6931472
          %v720 = vlog2.pop %v717
          %v721 = vmul.f32 %v720, 0.6931472
          %v722 = vadd.f32 %v714, %v719
          %v723 = vadd.f32 %v715, %v721
          %vm724 = vcmask 7168
          %725 = vst.msk [vmem:[#allocation5] sm:$0xff] %vm724, %v722
          %726 = vst.msk [vmem:[#allocation5 + $0x8] sm:$0xff] %vm724, %v723
        $region76: #{tpu_custom_call.1} parent=47 // pred_fallthru
          _
        // Predicated region
        $region77: #{tpu_custom_call.1} parent=47 // pred_check
          %p727 = pneg %p709
        $region78: #{tpu_custom_call.1} parent=47 // pred_check_branch
          %729 = sbr.rel (%p727) target = $region80
        $region79: #{tpu_custom_call.1} parent=47 // pred_region
          %v730 = vld [vmem:[#allocation5] sm:$0xff]
          %v731 = vld [vmem:[#allocation5 + $0x8] sm:$0xff]
          %733 = vset.pattern.permute.xlu0 0
          %734 = vperm.xlu0 %733, %v730
          %v735 = vpop.permute.xlu0 %734
          %738 = vset.pattern.permute.xlu0 0
          %739 = vperm.xlu0 %738, %v731
          %v740 = vpop.permute.xlu0 %739
          %v742 = vsub.f32 %v657, %v735
          %v743 = vsub.f32 %v659, %v740
          %744 = vst [vmem:[%s372] sm:$0xff] %v742
          %745 = vst [vmem:[%s372 + $0x8] sm:$0xff] %v743
        $region80: #{tpu_custom_call.1} parent=47 // pred_fallthru
          _
        %s746 = sand.u32 %s217, 1
        %s747 = scalar_lea.sflag [#allocation8], %s746
        %s748 = sand.u32 %s217, 1
        %s749 = smul.addr %s748, 16
        %s750 = scalar_lea.vmem [#allocation14], %s749
        // Predicated region
        $region81: #{tpu_custom_call.1} parent=47 // pred_check
          %p751 = pneg %p227
        $region82: #{tpu_custom_call.1} parent=47 // pred_check_branch
          %753 = sbr.rel (%p751) target = $region84
        $region83: #{tpu_custom_call.1} parent=47 // pred_region
          %s754 = smul.u32 %s31, %s30
          %s755 = smul.u32 2, %s29
          %757 = vsyncadd %s747, 0
          %s758 = sadd.s32 %s754, %s755
          %s759 = smul.addr %s758, 8
          %s760 = scalar_lea.hbm %s7, %s759
          %s761 = sshll.u32 %s750, 4
          %s762 = int_to_ptr.vmem [resolvable:$true] %s761
          %s763 = sshll.u32 %s760, 4
          %s764 = int_to_ptr.hbm [resolvable:$true] %s763
          %769 = dma.vmem_to_hbm [thread:$0]  %s762, 256, %s764, %s747, 128, 128, 8
        $region84: #{tpu_custom_call.1} parent=47 // pred_fallthru
          _
      $region48: #{tpu_custom_call.1} parent=5 // pred_fallthru
        _
      %p770 = scmp.le.s32.totalorder 2, %s19
      // Predicated region
      $region85: #{tpu_custom_call.1} parent=5 // pred_check
        %p771 = pneg %p770
      $region86: #{tpu_custom_call.1} parent=5 // pred_check_branch
        %773 = sbr.rel (%p771) target = $region88
      $region87: #{tpu_custom_call.1} parent=5 // pred_region
        %s774 = ssub.s32 %s19, 2
        // Predicated region
        $region89: #{tpu_custom_call.1} parent=87 // pred_check
          %p775 = pneg %p233
        $region90: #{tpu_custom_call.1} parent=87 // pred_check_branch
          %777 = sbr.rel (%p775) target = $region92
        $region91: #{tpu_custom_call.1} parent=87 // pred_region
          %s778 = sand.u32 %s218, 1
          %s779 = scalar_lea.sflag [#allocation8], %s778
          %s780 = sand.u32 %s218, 1
          %s781 = smul.addr %s780, 16
          %s782 = scalar_lea.vmem [#allocation14], %s781
          %784 = dma.done %s779, 256
        $region92: #{tpu_custom_call.1} parent=87 // pred_fallthru
          _
      $region88: #{tpu_custom_call.1} parent=5 // pred_fallthru
        _
    $region6: #{tpu_custom_call.1} parent=1 // loop_footer
      %s23 = sadd.s32 1, %s19
    $region7: #{tpu_custom_call.1} parent=1 // loop_footer_branch
      %18 = sbr.rel target = $region3
    $region8: #{tpu_custom_call.1} parent=1 // loop_exit
      _
    %785 = vsyncpa [#allocation7], 1
    %s786 = scalar_lea.sflag [#allocation7], 1
    %787 = vsyncpa %s786, 1
    %788 = vsyncpa [#allocation10], 1
    %789 = vsyncpa [#allocation13], 1
    %790 = vsyncpa [#allocation8], 1
    %s791 = scalar_lea.sflag [#allocation8], 1
    %792 = vsyncpa %s791, 1

</llo_original>
